<compile_context>
chip_gen: v5e
topology: v5e:2x2
jax: 0.10.0
libtpu: 0.0.40
codegen_flags: <defaults>
</compile_context>

<pallas_src>
import functools

import numpy as np
import jax
import jax.numpy as jnp
from jax import lax
from jax.experimental import pallas as pl
from jax.experimental.pallas import tpu as pltpu


def _relu_conv_bn_kernel(x_ref, w_ref, mask_ref, gamma_ref, beta_ref, o_ref,
                         xpad_ref, *, kernel_size, padding, img_w, fpad, eps):
    """One output-channel block: ReLU -> k x k conv (k*k MXU matmuls) -> BN."""
    k, p = kernel_size, padding
    c_in, total = x_ref.shape            # total = N * H * W (lane axis)
    co_blk = o_ref.shape[0]

    # ReLU once on the whole lane-dense slab.
    xr = jnp.maximum(x_ref[...].astype(jnp.float32), 0.0)

    # Stage the relu'd slab into a flat zero-padded scratch (128-aligned pad on
    # both ends) so every conv tap below is a plain static lane-slice.
    if k > 1:
        zeros_edge = jnp.zeros((c_in, fpad), jnp.float32)
        xpad_ref[:, :fpad] = zeros_edge
        xpad_ref[:, fpad + total:] = zeros_edge
        xpad_ref[:, fpad:fpad + total] = xr

    acc = jnp.zeros((co_blk, total), jnp.float32)
    for dh in range(k):
        for dw in range(k):
            dh_off, dw_off = dh - p, dw - p
            tap_idx = dh * k + dw
            if dh_off == 0 and dw_off == 0:
                tap = xr                                    # center tap: as-is
            else:
                delta = dh_off * img_w + dw_off             # flat spatial offset
                # tap[ci, j] = relu(x)[ci, j + delta] when the tap lands inside
                # the same image; the precomputed mask zeroes padding taps and
                # cross-row / cross-image positions.
                tap = (xpad_ref[:, fpad + delta:fpad + delta + total]
                       * mask_ref[tap_idx])
            w_tap = w_ref[:, tap_idx, :].astype(jnp.float32)    # (co_blk, C_in)
            acc = acc + jnp.dot(w_tap, tap, preferred_element_type=jnp.float32)

    # BatchNorm2d, training-mode batch statistics (biased variance), one pass.
    inv_n = 1.0 / float(total)
    mean = jnp.sum(acc, axis=1, keepdims=True) * inv_n
    var = jnp.sum(acc * acc, axis=1, keepdims=True) * inv_n - mean * mean
    # Fold the affine parameters into a single scale/bias FMA.
    scale = gamma_ref[...].astype(jnp.float32) * lax.rsqrt(var + eps)
    bias = beta_ref[...].astype(jnp.float32) - mean * scale
    o_ref[...] = (acc * scale + bias).astype(o_ref.dtype)
    # TODO(synk): BatchNorm running_mean/running_var buffer updates are not
    # emitted; only the training-mode forward output is produced.


def relu_conv_bn(x, weight, gamma=None, beta=None, *, stride=1, padding=None,
                 eps=1e-5, co_blk=None):
    """y = BatchNorm2d(Conv2d(ReLU(x), weight, stride, padding, bias=False)).

    x: (N, C_in, H, W); weight: (C_out, C_in, k, k); gamma/beta: (C_out,) or None.
    """
    N, C_in, H, W = x.shape
    C_out, C_in_w, k, k2 = weight.shape
    assert C_in_w == C_in and k == k2
    if padding is None:
        padding = k // 2
    if stride != 1 or 2 * padding != k - 1:
        # TODO(synk): strided / non-'same'-padded ReLUConvBN variants are not
        # lowered to Pallas here (they need an extra subsample stage).
        raise NotImplementedError("only stride=1, padding=(k-1)//2 supported")
    h_out, w_out = H, W
    total = N * H * W

    if gamma is None:                      # nn.BatchNorm2d default init / affine=False
        gamma = jnp.ones((C_out,), jnp.float32)
    if beta is None:
        beta = jnp.zeros((C_out,), jnp.float32)

    # ---- output-channel block selection -----------------------------------
    # Output blocks are (co_blk, N*H*W); co_blk must be C_out or a multiple of
    # 8 (sublane rule).  Prefer >= 2 grid steps (v7x megacore) when possible
    # and keep the per-step VMEM footprint well under the v7x 64 MiB budget.
    if co_blk is None:
        co_blk = C_out // 2 if C_out % 16 == 0 else C_out
        budget = 40 * 1024 * 1024
        while co_blk % 16 == 0 and 4 * total * (C_in + 2 * co_blk) > budget:
            co_blk //= 2
    assert C_out % co_blk == 0
    assert co_blk == C_out or co_blk % 8 == 0

    # ---- lane-dense operand layouts ----------------------------------------
    x_flat = jnp.transpose(x, (1, 0, 2, 3)).reshape(C_in, total)
    w_taps = jnp.transpose(weight, (0, 2, 3, 1)).reshape(C_out, k * k, C_in)
    gamma2 = jnp.asarray(gamma, jnp.float32).reshape(C_out, 1)
    beta2 = jnp.asarray(beta, jnp.float32).reshape(C_out, 1)

    # Per-tap validity masks (zero padding + flat-offset wrap), precomputed on
    # the host as constants: shape (k*k, 1, N*H*W), periodic with period H*W.
    r = np.arange(H * W)
    oh_np, ow_np = r // W, r % W
    masks = np.empty((k * k, 1, H * W), np.float32)
    for dh in range(k):
        for dw in range(k):
            ih, iw = oh_np + dh - padding, ow_np + dw - padding
            ok = (ih >= 0) & (ih < H) & (iw >= 0) & (iw < W)
            masks[dh * k + dw, 0, :] = ok.astype(np.float32)
    masks = jnp.asarray(np.tile(masks, (1, 1, N)))

    # 128-aligned flat padding for the staging scratch (max |tap offset| is
    # padding*(W+1)).
    fpad = ((padding * (W + 1) + 127) // 128) * 128 if k > 1 else 0

    kernel = functools.partial(
        _relu_conv_bn_kernel, kernel_size=k, padding=padding, img_w=W,
        fpad=fpad, eps=eps)

    out_flat = pl.pallas_call(
        kernel,
        out_shape=jax.ShapeDtypeStruct((C_out, total), x.dtype),
        grid_spec=pltpu.PrefetchScalarGridSpec(
            num_scalar_prefetch=0,
            grid=(C_out // co_blk,),
            in_specs=[
                pl.BlockSpec((C_in, total), lambda i: (0, 0)),
                pl.BlockSpec((co_blk, k * k, C_in), lambda i: (i, 0, 0)),
                pl.BlockSpec((k * k, 1, total), lambda i: (0, 0, 0)),
                pl.BlockSpec((co_blk, 1), lambda i: (i, 0)),
                pl.BlockSpec((co_blk, 1), lambda i: (i, 0)),
            ],
            out_specs=pl.BlockSpec((co_blk, total), lambda i: (i, 0)),
            scratch_shapes=[
                pltpu.VMEM((C_in, total + 2 * fpad), jnp.float32),
            ],
        ),
        compiler_params=pltpu.CompilerParams(
            dimension_semantics=("parallel",),
            vmem_limit_bytes=48 * 1024 * 1024),
    )(x_flat, w_taps, masks, gamma2, beta2)

    return jnp.transpose(out_flat.reshape(C_out, N, h_out, w_out), (1, 0, 2, 3))


def _reference(x, weight, gamma, beta, stride, padding, eps=1e-5):
    """Pure-JAX reference matching PyTorch ReLU->Conv2d->BatchNorm2d (train)."""
    y = lax.conv_general_dilated(
        jnp.maximum(x, 0.0), weight, (stride, stride),
        [(padding, padding), (padding, padding)],
        dimension_numbers=("NCHW", "OIHW", "NCHW"))
    m = jnp.mean(y, axis=(0, 2, 3), keepdims=True)
    v = jnp.mean((y - m) ** 2, axis=(0, 2, 3), keepdims=True)
    yhat = (y - m) * lax.rsqrt(v + eps)
    return yhat * gamma.reshape(1, -1, 1, 1) + beta.reshape(1, -1, 1, 1)


if __name__ == "__main__":
    key = jax.random.PRNGKey(0)
    kx, kw3, kw1, kg, kb = jax.random.split(key, 5)

    N, C_in, C_out, H, W = 2, 4, 8, 16, 16
    x = jax.random.normal(kx, (N, C_in, H, W), dtype=jnp.float32)

    # --- 3x3, stride 1, padding 1 (canonical ReLUConvBN), default affine -----
    w3 = jax.random.normal(kw3, (C_out, C_in, 3, 3), jnp.float32) * 0.2
    gamma = jnp.ones((C_out,), jnp.float32)    # PyTorch BatchNorm2d defaults
    beta = jnp.zeros((C_out,), jnp.float32)
    y3 = jax.block_until_ready(relu_conv_bn(x, w3, gamma, beta,
                                            stride=1, padding=1))
    assert y3.shape == (N, C_out, H, W)
    r3 = _reference(x, w3, gamma, beta, 1, 1)
    assert float(jnp.max(jnp.abs(y3 - r3))) < 1e-3

    # --- 1x1, stride 1, padding 0, non-trivial affine ------------------------
    w1 = jax.random.normal(kw1, (C_out, C_in, 1, 1), jnp.float32)
    gamma1 = 0.5 + jax.random.uniform(kg, (C_out,), jnp.float32)
    beta1 = jax.random.normal(kb, (C_out,), jnp.float32)
    y1 = jax.block_until_ready(relu_conv_bn(x, w1, gamma1, beta1,
                                            stride=1, padding=0))
    assert y1.shape == (N, C_out, H, W)
    r1 = _reference(x, w1, gamma1, beta1, 1, 0)
    assert float(jnp.max(jnp.abs(y1 - r1))) < 1e-3

    print("KERNEL_OK")
</pallas_src>

<mosaic_0001>
module attributes {stable_mosaic.version = 11 : i64} {
  func.func @_relu_conv_bn_kernel(%arg0: i32, %arg1: memref<4x512xf32, #tpu.memory_space<vmem>>, %arg2: memref<8x9x4xf32, #tpu.memory_space<vmem>>, %arg3: memref<9x1x512xf32, #tpu.memory_space<vmem>>, %arg4: memref<8x1xf32, #tpu.memory_space<vmem>>, %arg5: memref<8x1xf32, #tpu.memory_space<vmem>>, %arg6: memref<8x512xf32, #tpu.memory_space<vmem>>, %arg7: memref<4x768xf32, #tpu.memory_space<vmem>>) attributes {dimension_semantics = [#tpu.dimension_semantics<parallel>], iteration_bounds = array<i64: 1>, scalar_prefetch = 0 : i64, scratch_operands = 1 : i64, tpu.core_type = #tpu.core_type<tc>, window_params = [{pipeline_mode = #tpu.pipeline_mode<synchronous>, transform_indices = @transform_0, window_bounds = array<i64: 4, 512>}, {transform_indices = @transform_1, window_bounds = array<i64: 8, 9, 4>}, {pipeline_mode = #tpu.pipeline_mode<synchronous>, transform_indices = @transform_2, window_bounds = array<i64: 9, 1, 512>}, {transform_indices = @transform_3, window_bounds = array<i64: 8, 1>}, {transform_indices = @transform_4, window_bounds = array<i64: 8, 1>}, {transform_indices = @transform_5, window_bounds = array<i64: 8, 512>}]} {
    %c0 = arith.constant 0 : index
    %c0_0 = arith.constant 0 : index
    %0 = vector.load %arg1[%c0, %c0_0] : memref<4x512xf32, #tpu.memory_space<vmem>>, vector<4x512xf32>
    %cst = arith.constant 0.000000e+00 : f32
    %1 = vector.broadcast %cst : f32 to vector<4x512xf32>
    %2 = arith.maximumf %0, %1 : vector<4x512xf32>
    %cst_1 = arith.constant 0.000000e+00 : f32
    %3 = vector.broadcast %cst_1 : f32 to vector<4x128xf32>
    %c0_2 = arith.constant 0 : index
    %c0_3 = arith.constant 0 : index
    %4 = vector.load %arg7[%c0_2, %c0_3] : memref<4x768xf32, #tpu.memory_space<vmem>>, vector<4x128xf32>
    tpu.vector_store %arg7[%c0_2, %c0_3], %3 {strides = array<i32>} : memref<4x768xf32, #tpu.memory_space<vmem>>, vector<4x128xf32>,
    %c0_4 = arith.constant 0 : index
    %c640 = arith.constant 640 : index
    %5 = vector.load %arg7[%c0_4, %c640] : memref<4x768xf32, #tpu.memory_space<vmem>>, vector<4x128xf32>
    tpu.vector_store %arg7[%c0_4, %c640], %3 {strides = array<i32>} : memref<4x768xf32, #tpu.memory_space<vmem>>, vector<4x128xf32>,
    %c0_5 = arith.constant 0 : index
    %c128 = arith.constant 128 : index
    %6 = vector.load %arg7[%c0_5, %c128] : memref<4x768xf32, #tpu.memory_space<vmem>>, vector<4x512xf32>
    tpu.vector_store %arg7[%c0_5, %c128], %2 {strides = array<i32>} : memref<4x768xf32, #tpu.memory_space<vmem>>, vector<4x512xf32>,
    %cst_6 = arith.constant 0.000000e+00 : f32
    %7 = vector.broadcast %cst_6 : f32 to vector<8x512xf32>
    %c0_7 = arith.constant 0 : index
    %c111 = arith.constant 111 : index
    %8 = vector.load %arg7[%c0_7, %c111] : memref<4x768xf32, #tpu.memory_space<vmem>>, vector<4x512xf32>
    %c0_8 = arith.constant 0 : index
    %c0_9 = arith.constant 0 : index
    %c0_10 = arith.constant 0 : index
    %9 = vector.load %arg3[%c0_8, %c0_9, %c0_10] : memref<9x1x512xf32, #tpu.memory_space<vmem>>, vector<1x1x512xf32>
    %10 = vector.shape_cast %9 : vector<1x1x512xf32> to vector<1x512xf32>
    %11 = vector.broadcast %10 : vector<1x512xf32> to vector<4x512xf32>
    %12 = arith.mulf %8, %11 : vector<4x512xf32>
    %c0_11 = arith.constant 0 : index
    %c0_12 = arith.constant 0 : index
    %c0_13 = arith.constant 0 : index
    %13 = vector.load %arg2[%c0_11, %c0_12, %c0_13] : memref<8x9x4xf32, #tpu.memory_space<vmem>>, vector<8x1x4xf32>
    %14 = vector.shape_cast %13 : vector<8x1x4xf32> to vector<8x4xf32>
    %cst_14 = arith.constant dense<0.000000e+00> : vector<8x512xf32>
    %15 = tpu.matmul %14, %12, %cst_14 {dimension_numbers = #tpu.dot_dimension_numbers<[1], [0], [0], [1], [0, 0, 1, 1], [], []>} : vector<8x4xf32>, vector<4x512xf32>, vector<8x512xf32> -> vector<8x512xf32>
    %16 = arith.addf %7, %15 : vector<8x512xf32>
    %c0_15 = arith.constant 0 : index
    %c112 = arith.constant 112 : index
    %17 = vector.load %arg7[%c0_15, %c112] : memref<4x768xf32, #tpu.memory_space<vmem>>, vector<4x512xf32>
    %c1 = arith.constant 1 : index
    %c0_16 = arith.constant 0 : index
    %c0_17 = arith.constant 0 : index
    %18 = vector.load %arg3[%c1, %c0_16, %c0_17] : memref<9x1x512xf32, #tpu.memory_space<vmem>>, vector<1x1x512xf32>
    %19 = vector.shape_cast %18 : vector<1x1x512xf32> to vector<1x512xf32>
    %20 = vector.broadcast %19 : vector<1x512xf32> to vector<4x512xf32>
    %21 = arith.mulf %17, %20 : vector<4x512xf32>
    %c0_18 = arith.constant 0 : index
    %c1_19 = arith.constant 1 : index
    %c0_20 = arith.constant 0 : index
    %22 = vector.load %arg2[%c0_18, %c1_19, %c0_20] : memref<8x9x4xf32, #tpu.memory_space<vmem>>, vector<8x1x4xf32>
    %23 = vector.shape_cast %22 : vector<8x1x4xf32> to vector<8x4xf32>
    %cst_21 = arith.constant dense<0.000000e+00> : vector<8x512xf32>
    %24 = tpu.matmul %23, %21, %cst_21 {dimension_numbers = #tpu.dot_dimension_numbers<[1], [0], [0], [1], [0, 0, 1, 1], [], []>} : vector<8x4xf32>, vector<4x512xf32>, vector<8x512xf32> -> vector<8x512xf32>
    %25 = arith.addf %16, %24 : vector<8x512xf32>
    %c0_22 = arith.constant 0 : index
    %c113 = arith.constant 113 : index
    %26 = vector.load %arg7[%c0_22, %c113] : memref<4x768xf32, #tpu.memory_space<vmem>>, vector<4x512xf32>
    %c2 = arith.constant 2 : index
    %c0_23 = arith.constant 0 : index
    %c0_24 = arith.constant 0 : index
    %27 = vector.load %arg3[%c2, %c0_23, %c0_24] : memref<9x1x512xf32, #tpu.memory_space<vmem>>, vector<1x1x512xf32>
    %28 = vector.shape_cast %27 : vector<1x1x512xf32> to vector<1x512xf32>
    %29 = vector.broadcast %28 : vector<1x512xf32> to vector<4x512xf32>
    %30 = arith.mulf %26, %29 : vector<4x512xf32>
    %c0_25 = arith.constant 0 : index
    %c2_26 = arith.constant 2 : index
    %c0_27 = arith.constant 0 : index
    %31 = vector.load %arg2[%c0_25, %c2_26, %c0_27] : memref<8x9x4xf32, #tpu.memory_space<vmem>>, vector<8x1x4xf32>
    %32 = vector.shape_cast %31 : vector<8x1x4xf32> to vector<8x4xf32>
    %cst_28 = arith.constant dense<0.000000e+00> : vector<8x512xf32>
    %33 = tpu.matmul %32, %30, %cst_28 {dimension_numbers = #tpu.dot_dimension_numbers<[1], [0], [0], [1], [0, 0, 1, 1], [], []>} : vector<8x4xf32>, vector<4x512xf32>, vector<8x512xf32> -> vector<8x512xf32>
    %34 = arith.addf %25, %33 : vector<8x512xf32>
    %c0_29 = arith.constant 0 : index
    %c127 = arith.constant 127 : index
    %35 = vector.load %arg7[%c0_29, %c127] : memref<4x768xf32, #tpu.memory_space<vmem>>, vector<4x512xf32>
    %c3 = arith.constant 3 : index
    %c0_30 = arith.constant 0 : index
    %c0_31 = arith.constant 0 : index
    %36 = vector.load %arg3[%c3, %c0_30, %c0_31] : memref<9x1x512xf32, #tpu.memory_space<vmem>>, vector<1x1x512xf32>
    %37 = vector.shape_cast %36 : vector<1x1x512xf32> to vector<1x512xf32>
    %38 = vector.broadcast %37 : vector<1x512xf32> to vector<4x512xf32>
    %39 = arith.mulf %35, %38 : vector<4x512xf32>
    %c0_32 = arith.constant 0 : index
    %c3_33 = arith.constant 3 : index
    %c0_34 = arith.constant 0 : index
    %40 = vector.load %arg2[%c0_32, %c3_33, %c0_34] : memref<8x9x4xf32, #tpu.memory_space<vmem>>, vector<8x1x4xf32>
    %41 = vector.shape_cast %40 : vector<8x1x4xf32> to vector<8x4xf32>
    %cst_35 = arith.constant dense<0.000000e+00> : vector<8x512xf32>
    %42 = tpu.matmul %41, %39, %cst_35 {dimension_numbers = #tpu.dot_dimension_numbers<[1], [0], [0], [1], [0, 0, 1, 1], [], []>} : vector<8x4xf32>, vector<4x512xf32>, vector<8x512xf32> -> vector<8x512xf32>
    %43 = arith.addf %34, %42 : vector<8x512xf32>
    %c0_36 = arith.constant 0 : index
    %c4 = arith.constant 4 : index
    %c0_37 = arith.constant 0 : index
    %44 = vector.load %arg2[%c0_36, %c4, %c0_37] : memref<8x9x4xf32, #tpu.memory_space<vmem>>, vector<8x1x4xf32>
    %45 = vector.shape_cast %44 : vector<8x1x4xf32> to vector<8x4xf32>
    %cst_38 = arith.constant dense<0.000000e+00> : vector<8x512xf32>
    %46 = tpu.matmul %45, %2, %cst_38 {dimension_numbers = #tpu.dot_dimension_numbers<[1], [0], [0], [1], [0, 0, 1, 1], [], []>} : vector<8x4xf32>, vector<4x512xf32>, vector<8x512xf32> -> vector<8x512xf32>
    %47 = arith.addf %43, %46 : vector<8x512xf32>
    %c0_39 = arith.constant 0 : index
    %c129 = arith.constant 129 : index
    %48 = vector.load %arg7[%c0_39, %c129] : memref<4x768xf32, #tpu.memory_space<vmem>>, vector<4x512xf32>
    %c5 = arith.constant 5 : index
    %c0_40 = arith.constant 0 : index
    %c0_41 = arith.constant 0 : index
    %49 = vector.load %arg3[%c5, %c0_40, %c0_41] : memref<9x1x512xf32, #tpu.memory_space<vmem>>, vector<1x1x512xf32>
    %50 = vector.shape_cast %49 : vector<1x1x512xf32> to vector<1x512xf32>
    %51 = vector.broadcast %50 : vector<1x512xf32> to vector<4x512xf32>
    %52 = arith.mulf %48, %51 : vector<4x512xf32>
    %c0_42 = arith.constant 0 : index
    %c5_43 = arith.constant 5 : index
    %c0_44 = arith.constant 0 : index
    %53 = vector.load %arg2[%c0_42, %c5_43, %c0_44] : memref<8x9x4xf32, #tpu.memory_space<vmem>>, vector<8x1x4xf32>
    %54 = vector.shape_cast %53 : vector<8x1x4xf32> to vector<8x4xf32>
    %cst_45 = arith.constant dense<0.000000e+00> : vector<8x512xf32>
    %55 = tpu.matmul %54, %52, %cst_45 {dimension_numbers = #tpu.dot_dimension_numbers<[1], [0], [0], [1], [0, 0, 1, 1], [], []>} : vector<8x4xf32>, vector<4x512xf32>, vector<8x512xf32> -> vector<8x512xf32>
    %56 = arith.addf %47, %55 : vector<8x512xf32>
    %c0_46 = arith.constant 0 : index
    %c143 = arith.constant 143 : index
    %57 = vector.load %arg7[%c0_46, %c143] : memref<4x768xf32, #tpu.memory_space<vmem>>, vector<4x512xf32>
    %c6 = arith.constant 6 : index
    %c0_47 = arith.constant 0 : index
    %c0_48 = arith.constant 0 : index
    %58 = vector.load %arg3[%c6, %c0_47, %c0_48] : memref<9x1x512xf32, #tpu.memory_space<vmem>>, vector<1x1x512xf32>
    %59 = vector.shape_cast %58 : vector<1x1x512xf32> to vector<1x512xf32>
    %60 = vector.broadcast %59 : vector<1x512xf32> to vector<4x512xf32>
    %61 = arith.mulf %57, %60 : vector<4x512xf32>
    %c0_49 = arith.constant 0 : index
    %c6_50 = arith.constant 6 : index
    %c0_51 = arith.constant 0 : index
    %62 = vector.load %arg2[%c0_49, %c6_50, %c0_51] : memref<8x9x4xf32, #tpu.memory_space<vmem>>, vector<8x1x4xf32>
    %63 = vector.shape_cast %62 : vector<8x1x4xf32> to vector<8x4xf32>
    %cst_52 = arith.constant dense<0.000000e+00> : vector<8x512xf32>
    %64 = tpu.matmul %63, %61, %cst_52 {dimension_numbers = #tpu.dot_dimension_numbers<[1], [0], [0], [1], [0, 0, 1, 1], [], []>} : vector<8x4xf32>, vector<4x512xf32>, vector<8x512xf32> -> vector<8x512xf32>
    %65 = arith.addf %56, %64 : vector<8x512xf32>
    %c0_53 = arith.constant 0 : index
    %c144 = arith.constant 144 : index
    %66 = vector.load %arg7[%c0_53, %c144] : memref<4x768xf32, #tpu.memory_space<vmem>>, vector<4x512xf32>
    %c7 = arith.constant 7 : index
    %c0_54 = arith.constant 0 : index
    %c0_55 = arith.constant 0 : index
    %67 = vector.load %arg3[%c7, %c0_54, %c0_55] : memref<9x1x512xf32, #tpu.memory_space<vmem>>, vector<1x1x512xf32>
    %68 = vector.shape_cast %67 : vector<1x1x512xf32> to vector<1x512xf32>
    %69 = vector.broadcast %68 : vector<1x512xf32> to vector<4x512xf32>
    %70 = arith.mulf %66, %69 : vector<4x512xf32>
    %c0_56 = arith.constant 0 : index
    %c7_57 = arith.constant 7 : index
    %c0_58 = arith.constant 0 : index
    %71 = vector.load %arg2[%c0_56, %c7_57, %c0_58] : memref<8x9x4xf32, #tpu.memory_space<vmem>>, vector<8x1x4xf32>
    %72 = vector.shape_cast %71 : vector<8x1x4xf32> to vector<8x4xf32>
    %cst_59 = arith.constant dense<0.000000e+00> : vector<8x512xf32>
    %73 = tpu.matmul %72, %70, %cst_59 {dimension_numbers = #tpu.dot_dimension_numbers<[1], [0], [0], [1], [0, 0, 1, 1], [], []>} : vector<8x4xf32>, vector<4x512xf32>, vector<8x512xf32> -> vector<8x512xf32>
    %74 = arith.addf %65, %73 : vector<8x512xf32>
    %c0_60 = arith.constant 0 : index
    %c145 = arith.constant 145 : index
    %75 = vector.load %arg7[%c0_60, %c145] : memref<4x768xf32, #tpu.memory_space<vmem>>, vector<4x512xf32>
    %c8 = arith.constant 8 : index
    %c0_61 = arith.constant 0 : index
    %c0_62 = arith.constant 0 : index
    %76 = vector.load %arg3[%c8, %c0_61, %c0_62] : memref<9x1x512xf32, #tpu.memory_space<vmem>>, vector<1x1x512xf32>
    %77 = vector.shape_cast %76 : vector<1x1x512xf32> to vector<1x512xf32>
    %78 = vector.broadcast %77 : vector<1x512xf32> to vector<4x512xf32>
    %79 = arith.mulf %75, %78 : vector<4x512xf32>
    %c0_63 = arith.constant 0 : index
    %c8_64 = arith.constant 8 : index
    %c0_65 = arith.constant 0 : index
    %80 = vector.load %arg2[%c0_63, %c8_64, %c0_65] : memref<8x9x4xf32, #tpu.memory_space<vmem>>, vector<8x1x4xf32>
    %81 = vector.shape_cast %80 : vector<8x1x4xf32> to vector<8x4xf32>
    %cst_66 = arith.constant dense<0.000000e+00> : vector<8x512xf32>
    %82 = tpu.matmul %81, %79, %cst_66 {dimension_numbers = #tpu.dot_dimension_numbers<[1], [0], [0], [1], [0, 0, 1, 1], [], []>} : vector<8x4xf32>, vector<4x512xf32>, vector<8x512xf32> -> vector<8x512xf32>
    %83 = arith.addf %74, %82 : vector<8x512xf32>
    %cst_67 = arith.constant dense<0.000000e+00> : vector<8xf32>
    %84 = vector.multi_reduction <add>, %83, %cst_67 [1] : vector<8x512xf32> to vector<8xf32>
    %85 = vector.shape_cast %84 : vector<8xf32> to vector<8x1xf32>
    %cst_68 = arith.constant 0.001953125 : f32
    %86 = vector.broadcast %cst_68 : f32 to vector<8x1xf32>
    %87 = arith.mulf %85, %86 : vector<8x1xf32>
    %88 = arith.mulf %83, %83 : vector<8x512xf32>
    %cst_69 = arith.constant dense<0.000000e+00> : vector<8xf32>
    %89 = vector.multi_reduction <add>, %88, %cst_69 [1] : vector<8x512xf32> to vector<8xf32>
    %90 = vector.shape_cast %89 : vector<8xf32> to vector<8x1xf32>
    %cst_70 = arith.constant 0.001953125 : f32
    %91 = vector.broadcast %cst_70 : f32 to vector<8x1xf32>
    %92 = arith.mulf %90, %91 : vector<8x1xf32>
    %93 = arith.mulf %87, %87 : vector<8x1xf32>
    %94 = arith.subf %92, %93 : vector<8x1xf32>
    %c0_71 = arith.constant 0 : index
    %c0_72 = arith.constant 0 : index
    %95 = vector.load %arg4[%c0_71, %c0_72] : memref<8x1xf32, #tpu.memory_space<vmem>>, vector<8x1xf32>
    %cst_73 = arith.constant 9.99999974E-6 : f32
    %96 = vector.broadcast %cst_73 : f32 to vector<8x1xf32>
    %97 = arith.addf %94, %96 : vector<8x1xf32>
    %98 = math.rsqrt %97 : vector<8x1xf32>
    %99 = arith.mulf %95, %98 : vector<8x1xf32>
    %c0_74 = arith.constant 0 : index
    %c0_75 = arith.constant 0 : index
    %100 = vector.load %arg5[%c0_74, %c0_75] : memref<8x1xf32, #tpu.memory_space<vmem>>, vector<8x1xf32>
    %101 = arith.mulf %87, %99 : vector<8x1xf32>
    %102 = arith.subf %100, %101 : vector<8x1xf32>
    %103 = vector.broadcast %99 : vector<8x1xf32> to vector<8x512xf32>
    %104 = arith.mulf %83, %103 : vector<8x512xf32>
    %105 = vector.broadcast %102 : vector<8x1xf32> to vector<8x512xf32>
    %106 = arith.addf %104, %105 : vector<8x512xf32>
    %c0_76 = arith.constant 0 : index
    %c0_77 = arith.constant 0 : index
    %107 = vector.load %arg6[%c0_76, %c0_77] : memref<8x512xf32, #tpu.memory_space<vmem>>, vector<8x512xf32>
    tpu.vector_store %arg6[%c0_76, %c0_77], %106 {strides = array<i32>} : memref<8x512xf32, #tpu.memory_space<vmem>>, vector<8x512xf32>,
    return
  }
  func.func @transform_0(%arg0: i32) -> (i32, i32) {
    %c0_i32 = arith.constant 0 : i32
    %c0_i32_0 = arith.constant 0 : i32
    %c0_i32_1 = arith.constant 0 : i32
    return %c0_i32, %c0_i32_0 : i32, i32
  }
  func.func @transform_1(%arg0: i32) -> (i32, i32, i32) {
    %c0_i32 = arith.constant 0 : i32
    %c0_i32_0 = arith.constant 0 : i32
    %c0_i32_1 = arith.constant 0 : i32
    return %arg0, %c0_i32, %c0_i32_0 : i32, i32, i32
  }
  func.func @transform_2(%arg0: i32) -> (i32, i32, i32) {
    %c0_i32 = arith.constant 0 : i32
    %c0_i32_0 = arith.constant 0 : i32
    %c0_i32_1 = arith.constant 0 : i32
    %c0_i32_2 = arith.constant 0 : i32
    return %c0_i32, %c0_i32_0, %c0_i32_1 : i32, i32, i32
  }
  func.func @transform_3(%arg0: i32) -> (i32, i32) {
    %c0_i32 = arith.constant 0 : i32
    %c0_i32_0 = arith.constant 0 : i32
    return %arg0, %c0_i32 : i32, i32
  }
  func.func @transform_4(%arg0: i32) -> (i32, i32) {
    %c0_i32 = arith.constant 0 : i32
    %c0_i32_0 = arith.constant 0 : i32
    return %arg0, %c0_i32 : i32, i32
  }
  func.func @transform_5(%arg0: i32) -> (i32, i32) {
    %c0_i32 = arith.constant 0 : i32
    %c0_i32_0 = arith.constant 0 : i32
    return %arg0, %c0_i32 : i32, i32
  }
}

</mosaic_0001>

<llo_original>
// kernel: tpu_custom_call.1
$region0: #{tpu_custom_call.1}
  #allocation0 [shape = 'u32[]', space=smem, size = 0x4, offset = 0x4, fixed_abs, tag = 'smem constant byte address 0x4 - core index']
  #allocation1 [shape = 'u32[72,128]{1,0:T(1,128)}', space=vmem, size = 0x9000, scoped, tag = 'internal scratch']
  #allocation2 [shape = 'f32[4,768]{1,0:T(4,128)}', space=vmem, size = 0x3000, scoped, tag = 'scratch operand']
  %s0 = inlined_call_operand.vmem [shape: f32[4,512], index: 0, kind: input, shape index: {}]
  %s1 = inlined_call_operand.vmem [shape: f32[8,9,4], index: 1, kind: input, shape index: {}]
  %s2 = inlined_call_operand.vmem [shape: f32[9,1,512], index: 2, kind: input, shape index: {}]
  %s3 = inlined_call_operand.vmem [shape: f32[8,1], index: 3, kind: input, shape index: {}]
  %s4 = inlined_call_operand.vmem [shape: f32[8,1], index: 4, kind: input, shape index: {}]
  %s5 = inlined_call_operand.hbm [shape: f32[8,512], index: 5, kind: output, shape index: {}]
  %s6 = sld [smem:[#allocation0]]
  $region30: #{tpu_custom_call.1} parent=0
    _
  %s8 = ssub.s32 1, %s6
  %s9 = scalar_select 0, %s8, %s6
  $region1: #{tpu_custom_call.1} parent=0
    #allocation3 [shape = 'u8[16384]{0}', space=vmem, size = 0x4000, scoped, tag = 'output window, operand 0, single buffered']
    #allocation4 [shape = 's32[1]{0}', space=sflag, size = 0x4, scoped, tag = 'scoped memory for tpu_custom_call.1']
    %10 = vsyncpa [#allocation4], 0
    // Predicated region
    $region2: #{tpu_custom_call.1} parent=1 // pred_check
      _
    $region3: #{tpu_custom_call.1} parent=1 // pred_check_branch
      %12 = sbr.rel (0) target = $region5
    $region4: #{tpu_custom_call.1} parent=1 // pred_region
      _
    $region5: #{tpu_custom_call.1} parent=1 // pred_fallthru
      _
    // Predicated region
    $region6: #{tpu_custom_call.1} parent=1 // pred_check
      _
    $region7: #{tpu_custom_call.1} parent=1 // pred_check_branch
      %14 = sbr.rel (0) target = $region9
    $region8: #{tpu_custom_call.1} parent=1 // pred_region
      _
    $region9: #{tpu_custom_call.1} parent=1 // pred_fallthru
      _
    // Predicated region
    $region10: #{tpu_custom_call.1} parent=1 // pred_check
      _
    $region11: #{tpu_custom_call.1} parent=1 // pred_check_branch
      %16 = sbr.rel (0) target = $region13
    $region12: #{tpu_custom_call.1} parent=1 // pred_region
      _
    $region13: #{tpu_custom_call.1} parent=1 // pred_fallthru
      _
    // Predicated region
    $region14: #{tpu_custom_call.1} parent=1 // pred_check
      _
    $region15: #{tpu_custom_call.1} parent=1 // pred_check_branch
      %18 = sbr.rel (0) target = $region17
    $region16: #{tpu_custom_call.1} parent=1 // pred_region
      _
    $region17: #{tpu_custom_call.1} parent=1 // pred_fallthru
      _
    // Predicated region
    $region18: #{tpu_custom_call.1} parent=1 // pred_check
      _
    $region19: #{tpu_custom_call.1} parent=1 // pred_check_branch
      %20 = sbr.rel (0) target = $region21
    $region20: #{tpu_custom_call.1} parent=1 // pred_region
      _
    $region21: #{tpu_custom_call.1} parent=1 // pred_fallthru
      _
    %v21 = vld [vmem:[%s0] sm:$0xff]
    %v22 = vld [vmem:[%s0 + $0x8] sm:$0xff]
    %v23 = vmax.f32 %v21, 0.0
    %v24 = vmax.f32 %v22, 0.0
    %25 = vst [vmem:[#allocation2] sm:$0xf] 0.0
    %26 = vst [vmem:[#allocation2 + $0x14] sm:$0xf] 0.0
    %27 = vst [vmem:[#allocation2 + $0x4] sm:$0xff] %v23
    %28 = vst [vmem:[#allocation2 + $0xc] sm:$0xff] %v24
    %v29 = vld [vmem:[#allocation2] sm:$0xff]
    %v30 = vld [vmem:[#allocation2 + $0x8] sm:$0xff]
    %v31 = vld [vmem:[#allocation2 + $0x10] sm:$0xf]
    %v32 = vld [vmem:[%s2] sm:$0xf]
    %v34 = vperm.slane %v32, 0
    %v35 = vperm.slane %v32, 1
    %v36 = vperm.slane %v32, 2
    %v37 = vperm.slane %v32, 3
    %v38 = vrot.slane %v35, 4
    %v39 = vrot.slane %v37, 4
    %vm40 = vcmask 1043456
    %v41 = vsel %vm40, %v34, %v38
    %v42 = vsel %vm40, %v36, %v39
    %43 = vrot.lane.b32.xlu0 %v41, 111
    %v44 = vpop.permute.xlu0 %43
    %45 = vrot.lane.b32.xlu0 %v42, 111
    %v46 = vpop.permute.xlu0 %45
    %v47 = vrot.slane %v44, 4
    %v48 = vrot.slane %v46, 4
    %vm49 = vcmask 908288
    %v50 = vsel %vm49, %v47, %v44
    %v51 = vsel %vm40, %v47, %v48
    %v52 = vsel %vm49, %v51, %v46
    %v56 = vmul.f32 %v29, %v50
    %v57 = vmul.f32 %v30, %v52
    %v58 = vmul.f32 %v31, %v48
    %v59 = vld [vmem:[%s1] sm:$0x1]
    %v60 = vld [vmem:[%s1 + $0x10] sm:$0x1]
    %v61 = vld [vmem:[%s1 + $0x20] sm:$0x1]
    %v62 = vld [vmem:[%s1 + $0x30] sm:$0x1]
    %v63 = vld [vmem:[%s1 + $0x40] sm:$0x1]
    %v64 = vld [vmem:[%s1 + $0x50] sm:$0x1]
    %v65 = vld [vmem:[%s1 + $0x60] sm:$0x1]
    %v66 = vld [vmem:[%s1 + $0x70] sm:$0x1]
    %s67 = scalar_lea.vmem %s2, 4
    %v68 = vld [vmem:[%s67] sm:$0xf]
    %v70 = vperm.slane %v68, 0
    %v71 = vperm.slane %v68, 1
    %v72 = vperm.slane %v68, 2
    %v73 = vperm.slane %v68, 3
    %v74 = vrot.slane %v71, 4
    %v75 = vrot.slane %v73, 4
    %v76 = vsel %vm40, %v70, %v74
    %v77 = vsel %vm40, %v72, %v75
    %78 = vrot.lane.b32.xlu0 %v76, 112
    %v79 = vpop.permute.xlu0 %78
    %80 = vrot.lane.b32.xlu0 %v77, 112
    %v81 = vpop.permute.xlu0 %80
    %v82 = vrot.slane %v79, 4
    %v83 = vrot.slane %v81, 4
    %vm84 = vcmask 916480
    %v85 = vsel %vm84, %v82, %v79
    %v86 = vsel %vm40, %v82, %v83
    %v87 = vsel %vm84, %v86, %v81
    %v91 = vmul.f32 %v29, %v85
    %v92 = vmul.f32 %v30, %v87
    %v93 = vmul.f32 %v31, %v83
    %v94 = vld [vmem:[%s1 + $0x1] sm:$0x1]
    %v95 = vld [vmem:[%s1 + $0x11] sm:$0x1]
    %v96 = vld [vmem:[%s1 + $0x21] sm:$0x1]
    %v97 = vld [vmem:[%s1 + $0x31] sm:$0x1]
    %v98 = vld [vmem:[%s1 + $0x41] sm:$0x1]
    %v99 = vld [vmem:[%s1 + $0x51] sm:$0x1]
    %v100 = vld [vmem:[%s1 + $0x61] sm:$0x1]
    %v101 = vld [vmem:[%s1 + $0x71] sm:$0x1]
    %v110 = vrot.slane %v95, 7
    %vm111 = vcmask 1041409
    %v112 = vsel %vm111, %v110, %v94
    %v113 = vrot.slane %v96, 6
    %vm114 = vcmask 1042434
    %v115 = vsel %vm114, %v113, %v112
    %v116 = vrot.slane %v97, 5
    %vm117 = vcmask 1043459
    %v118 = vsel %vm117, %v116, %v115
    %v119 = vrot.slane %v98, 4
    %vm120 = vcmask 1044484
    %v121 = vsel %vm120, %v119, %v118
    %v122 = vrot.slane %v99, 3
    %vm123 = vcmask 1045509
    %v124 = vsel %vm123, %v122, %v121
    %v125 = vrot.slane %v100, 2
    %vm126 = vcmask 1046534
    %v127 = vsel %vm126, %v125, %v124
    %v128 = vrot.slane %v101, 1
    %vm129 = vcmask 1047559
    %v130 = vsel %vm129, %v128, %v127
    %134 = vst [vmem:[#allocation1] ss:$2 sm:$0xff] %v91
    %s135 = scalar_lea.vmem [#allocation1], 16
    %136 = vst [vmem:[%s135] ss:$2 sm:$0xff] %v92
    %s137 = scalar_lea.vmem [#allocation1], 32
    %138 = vst [vmem:[%s137] ss:$2 sm:$0xff] %v93
    %v139 = vld.sshfl [vmem:[#allocation1] sm:$0xff pattern:$0x75316420]
    %v140 = vld.sshfl [vmem:[#allocation1 + $0x8] sm:$0xff pattern:$0x75316420]
    %v141 = vld.sshfl [vmem:[#allocation1 + $0x10] sm:$0xff pattern:$0x75316420]
    %v142 = vld.sshfl [vmem:[#allocation1 + $0x18] sm:$0xff pattern:$0x75316420]
    %v143 = vld.sshfl [vmem:[#allocation1 + $0x20] sm:$0xff pattern:$0x75316420]
    %144 = vrot.lane.b32.xlu0 %v139, 16
    %v145 = vpop.permute.xlu0 %144
    %146 = vrot.lane.b32.xlu0 %v140, 16
    %v147 = vpop.permute.xlu0 %146
    %148 = vrot.lane.b32.xlu0 %v141, 16
    %v149 = vpop.permute.xlu0 %148
    %150 = vrot.lane.b32.xlu0 %v142, 16
    %v151 = vpop.permute.xlu0 %150
    %152 = vrot.lane.b32.xlu0 %v143, 16
    %v153 = vpop.permute.xlu0 %152
    %vm154 = vcmask 130048
    %v155 = vsel %vm154, %v145, %v147
    %v156 = vsel %vm154, %v147, %v149
    %v157 = vsel %vm154, %v149, %v151
    %v158 = vsel %vm154, %v151, %v153
    %vm159 = vcmask 31744
    %v160 = vsel %vm159, %v130, 0
    %v162 = vsel %vm40, %v155, 0
    %v164 = vsel %vm40, %v156, 0
    %v166 = vsel %vm40, %v157, 0
    %v168 = vsel %vm40, %v158, 0
    %170 = vmatpush.msra.mxu0 0.0
    %171 = vmatpush.msra.mxu0 0.0
    %172 = vmatpush.msra.mxu0 0.0
    %173 = vmatpush.msra.mxu0 0.0
    %174 = vmatpush.msra.mxu0 0.0
    %175 = vmatpush.msra.mxu0 0.0
    %176 = vmatpush.msra.mxu0 0.0
    %177 = vmatpush.msra.mxu0 0.0
    %178 = vmatpush.msra.mxu0 0.0
    %179 = vmatpush.msra.mxu0 0.0
    %180 = vmatpush.msra.mxu0 0.0
    %181 = vmatpush.msra.mxu0 0.0
    %182 = vmatpush.msra.mxu0 0.0
    %183 = vmatpush.msra.mxu0 0.0
    %184 = vmatpush.msra.mxu0 0.0
    %185 = vmatpush.msra.mxu0 %v162
    %186 = vmatmul.f32.gmra.mxu0 %v160
    %v187 = vpop.f32.mrf.mxu0
    %v188 = vadd.f32 0.0, %v187
    %189 = vdwg.mxu0
    %190 = vmatpush.msra.mxu0 0.0
    %191 = vmatpush.msra.mxu0 0.0
    %192 = vmatpush.msra.mxu0 0.0
    %193 = vmatpush.msra.mxu0 0.0
    %194 = vmatpush.msra.mxu0 0.0
    %195 = vmatpush.msra.mxu0 0.0
    %196 = vmatpush.msra.mxu0 0.0
    %197 = vmatpush.msra.mxu0 0.0
    %198 = vmatpush.msra.mxu0 0.0
    %199 = vmatpush.msra.mxu0 0.0
    %200 = vmatpush.msra.mxu0 0.0
    %201 = vmatpush.msra.mxu0 0.0
    %202 = vmatpush.msra.mxu0 0.0
    %203 = vmatpush.msra.mxu0 0.0
    %204 = vmatpush.msra.mxu0 0.0
    %205 = vmatpush.msra.mxu0 %v164
    %206 = vmatmul.f32.gmra.mxu0 %v160
    %v207 = vpop.f32.mrf.mxu0
    %v208 = vadd.f32 0.0, %v207
    %209 = vdwg.mxu0
    %210 = vmatpush.msra.mxu0 0.0
    %211 = vmatpush.msra.mxu0 0.0
    %212 = vmatpush.msra.mxu0 0.0
    %213 = vmatpush.msra.mxu0 0.0
    %214 = vmatpush.msra.mxu0 0.0
    %215 = vmatpush.msra.mxu0 0.0
    %216 = vmatpush.msra.mxu0 0.0
    %217 = vmatpush.msra.mxu0 0.0
    %218 = vmatpush.msra.mxu0 0.0
    %219 = vmatpush.msra.mxu0 0.0
    %220 = vmatpush.msra.mxu0 0.0
    %221 = vmatpush.msra.mxu0 0.0
    %222 = vmatpush.msra.mxu0 0.0
    %223 = vmatpush.msra.mxu0 0.0
    %224 = vmatpush.msra.mxu0 0.0
    %225 = vmatpush.msra.mxu0 %v166
    %226 = vmatmul.f32.gmra.mxu0 %v160
    %v227 = vpop.f32.mrf.mxu0
    %v228 = vadd.f32 0.0, %v227
    %229 = vdwg.mxu0
    %230 = vmatpush.msra.mxu0 0.0
    %231 = vmatpush.msra.mxu0 0.0
    %232 = vmatpush.msra.mxu0 0.0
    %233 = vmatpush.msra.mxu0 0.0
    %234 = vmatpush.msra.mxu0 0.0
    %235 = vmatpush.msra.mxu0 0.0
    %236 = vmatpush.msra.mxu0 0.0
    %237 = vmatpush.msra.mxu0 0.0
    %238 = vmatpush.msra.mxu0 0.0
    %239 = vmatpush.msra.mxu0 0.0
    %240 = vmatpush.msra.mxu0 0.0
    %241 = vmatpush.msra.mxu0 0.0
    %242 = vmatpush.msra.mxu0 0.0
    %243 = vmatpush.msra.mxu0 0.0
    %244 = vmatpush.msra.mxu0 0.0
    %245 = vmatpush.msra.mxu0 %v168
    %246 = vmatmul.f32.gmra.mxu0 %v160
    %v247 = vpop.f32.mrf.mxu0
    %v248 = vadd.f32 0.0, %v247
    %249 = vdwg.mxu0
    %v258 = vrot.slane %v60, 7
    %v259 = vsel %vm111, %v258, %v59
    %v260 = vrot.slane %v61, 6
    %v261 = vsel %vm114, %v260, %v259
    %v262 = vrot.slane %v62, 5
    %v263 = vsel %vm117, %v262, %v261
    %v264 = vrot.slane %v63, 4
    %v265 = vsel %vm120, %v264, %v263
    %v266 = vrot.slane %v64, 3
    %v267 = vsel %vm123, %v266, %v265
    %v268 = vrot.slane %v65, 2
    %v269 = vsel %vm126, %v268, %v267
    %v270 = vrot.slane %v66, 1
    %v271 = vsel %vm129, %v270, %v269
    %275 = vst [vmem:[#allocation1] ss:$2 sm:$0xff] %v56
    %s276 = scalar_lea.vmem [#allocation1], 16
    %277 = vst [vmem:[%s276] ss:$2 sm:$0xff] %v57
    %s278 = scalar_lea.vmem [#allocation1], 32
    %279 = vst [vmem:[%s278] ss:$2 sm:$0xff] %v58
    %v280 = vld.sshfl [vmem:[#allocation1] sm:$0xff pattern:$0x75316420]
    %v281 = vld.sshfl [vmem:[#allocation1 + $0x8] sm:$0xff pattern:$0x75316420]
    %v282 = vld.sshfl [vmem:[#allocation1 + $0x10] sm:$0xff pattern:$0x75316420]
    %v283 = vld.sshfl [vmem:[#allocation1 + $0x18] sm:$0xff pattern:$0x75316420]
    %v284 = vld.sshfl [vmem:[#allocation1 + $0x20] sm:$0xff pattern:$0x75316420]
    %285 = vrot.lane.b32.xlu0 %v280, 17
    %v286 = vpop.permute.xlu0 %285
    %287 = vrot.lane.b32.xlu0 %v281, 17
    %v288 = vpop.permute.xlu0 %287
    %289 = vrot.lane.b32.xlu0 %v282, 17
    %v290 = vpop.permute.xlu0 %289
    %291 = vrot.lane.b32.xlu0 %v283, 17
    %v292 = vpop.permute.xlu0 %291
    %293 = vrot.lane.b32.xlu0 %v284, 17
    %v294 = vpop.permute.xlu0 %293
    %vm295 = vcmask 138240
    %v296 = vsel %vm295, %v286, %v288
    %v297 = vsel %vm295, %v288, %v290
    %v298 = vsel %vm295, %v290, %v292
    %v299 = vsel %vm295, %v292, %v294
    %v300 = vsel %vm159, %v271, 0
    %v302 = vsel %vm40, %v296, 0
    %v304 = vsel %vm40, %v297, 0
    %v306 = vsel %vm40, %v298, 0
    %v308 = vsel %vm40, %v299, 0
    %310 = vmatpush.msra.mxu0 0.0
    %311 = vmatpush.msra.mxu0 0.0
    %312 = vmatpush.msra.mxu0 0.0
    %313 = vmatpush.msra.mxu0 0.0
    %314 = vmatpush.msra.mxu0 0.0
    %315 = vmatpush.msra.mxu0 0.0
    %316 = vmatpush.msra.mxu0 0.0
    %317 = vmatpush.msra.mxu0 0.0
    %318 = vmatpush.msra.mxu0 0.0
    %319 = vmatpush.msra.mxu0 0.0
    %320 = vmatpush.msra.mxu0 0.0
    %321 = vmatpush.msra.mxu0 0.0
    %322 = vmatpush.msra.mxu0 0.0
    %323 = vmatpush.msra.mxu0 0.0
    %324 = vmatpush.msra.mxu0 0.0
    %325 = vmatpush.msra.mxu0 %v302
    %326 = vmatmul.f32.gmra.mxu0 %v300
    %v327 = vpop.f32.mrf.mxu0
    %v328 = vadd.f32 %v188, %v327
    %329 = vdwg.mxu0
    %330 = vmatpush.msra.mxu0 0.0
    %331 = vmatpush.msra.mxu0 0.0
    %332 = vmatpush.msra.mxu0 0.0
    %333 = vmatpush.msra.mxu0 0.0
    %334 = vmatpush.msra.mxu0 0.0
    %335 = vmatpush.msra.mxu0 0.0
    %336 = vmatpush.msra.mxu0 0.0
    %337 = vmatpush.msra.mxu0 0.0
    %338 = vmatpush.msra.mxu0 0.0
    %339 = vmatpush.msra.mxu0 0.0
    %340 = vmatpush.msra.mxu0 0.0
    %341 = vmatpush.msra.mxu0 0.0
    %342 = vmatpush.msra.mxu0 0.0
    %343 = vmatpush.msra.mxu0 0.0
    %344 = vmatpush.msra.mxu0 0.0
    %345 = vmatpush.msra.mxu0 %v304
    %346 = vmatmul.f32.gmra.mxu0 %v300
    %v347 = vpop.f32.mrf.mxu0
    %v348 = vadd.f32 %v208, %v347
    %349 = vdwg.mxu0
    %350 = vmatpush.msra.mxu0 0.0
    %351 = vmatpush.msra.mxu0 0.0
    %352 = vmatpush.msra.mxu0 0.0
    %353 = vmatpush.msra.mxu0 0.0
    %354 = vmatpush.msra.mxu0 0.0
    %355 = vmatpush.msra.mxu0 0.0
    %356 = vmatpush.msra.mxu0 0.0
    %357 = vmatpush.msra.mxu0 0.0
    %358 = vmatpush.msra.mxu0 0.0
    %359 = vmatpush.msra.mxu0 0.0
    %360 = vmatpush.msra.mxu0 0.0
    %361 = vmatpush.msra.mxu0 0.0
    %362 = vmatpush.msra.mxu0 0.0
    %363 = vmatpush.msra.mxu0 0.0
    %364 = vmatpush.msra.mxu0 0.0
    %365 = vmatpush.msra.mxu0 %v306
    %366 = vmatmul.f32.gmra.mxu0 %v300
    %v367 = vpop.f32.mrf.mxu0
    %v368 = vadd.f32 %v228, %v367
    %369 = vdwg.mxu0
    %370 = vmatpush.msra.mxu0 0.0
    %371 = vmatpush.msra.mxu0 0.0
    %372 = vmatpush.msra.mxu0 0.0
    %373 = vmatpush.msra.mxu0 0.0
    %374 = vmatpush.msra.mxu0 0.0
    %375 = vmatpush.msra.mxu0 0.0
    %376 = vmatpush.msra.mxu0 0.0
    %377 = vmatpush.msra.mxu0 0.0
    %378 = vmatpush.msra.mxu0 0.0
    %379 = vmatpush.msra.mxu0 0.0
    %380 = vmatpush.msra.mxu0 0.0
    %381 = vmatpush.msra.mxu0 0.0
    %382 = vmatpush.msra.mxu0 0.0
    %383 = vmatpush.msra.mxu0 0.0
    %384 = vmatpush.msra.mxu0 0.0
    %385 = vmatpush.msra.mxu0 %v308
    %386 = vmatmul.f32.gmra.mxu0 %v300
    %v387 = vpop.f32.mrf.mxu0
    %v388 = vadd.f32 %v248, %v387
    %389 = vdwg.mxu0
    %v390 = vld [vmem:[#allocation2] sm:$0xff]
    %v391 = vld [vmem:[#allocation2 + $0x8] sm:$0xff]
    %v392 = vld [vmem:[#allocation2 + $0x10] sm:$0xf]
    %s393 = scalar_lea.vmem %s2, 8
    %v394 = vld [vmem:[%s393] sm:$0xf]
    %v396 = vperm.slane %v394, 0
    %v397 = vperm.slane %v394, 1
    %v398 = vperm.slane %v394, 2
    %v399 = vperm.slane %v394, 3
    %v400 = vrot.slane %v397, 4
    %v401 = vrot.slane %v399, 4
    %v402 = vsel %vm40, %v396, %v400
    %v403 = vsel %vm40, %v398, %v401
    %404 = vrot.lane.b32.xlu0 %v402, 113
    %v405 = vpop.permute.xlu0 %404
    %406 = vrot.lane.b32.xlu0 %v403, 113
    %v407 = vpop.permute.xlu0 %406
    %v408 = vrot.slane %v405, 4
    %v409 = vrot.slane %v407, 4
    %vm410 = vcmask 924672
    %v411 = vsel %vm410, %v408, %v405
    %v412 = vsel %vm40, %v408, %v409
    %v413 = vsel %vm410, %v412, %v407
    %v417 = vmul.f32 %v390, %v411
    %v418 = vmul.f32 %v391, %v413
    %v419 = vmul.f32 %v392, %v409
    %v420 = vld [vmem:[%s1 + $0x2] sm:$0x1]
    %v421 = vld [vmem:[%s1 + $0x12] sm:$0x1]
    %v422 = vld [vmem:[%s1 + $0x22] sm:$0x1]
    %v423 = vld [vmem:[%s1 + $0x32] sm:$0x1]
    %v424 = vld [vmem:[%s1 + $0x42] sm:$0x1]
    %v425 = vld [vmem:[%s1 + $0x52] sm:$0x1]
    %v426 = vld [vmem:[%s1 + $0x62] sm:$0x1]
    %v427 = vld [vmem:[%s1 + $0x72] sm:$0x1]
    %v436 = vrot.slane %v421, 7
    %v437 = vsel %vm111, %v436, %v420
    %v438 = vrot.slane %v422, 6
    %v439 = vsel %vm114, %v438, %v437
    %v440 = vrot.slane %v423, 5
    %v441 = vsel %vm117, %v440, %v439
    %v442 = vrot.slane %v424, 4
    %v443 = vsel %vm120, %v442, %v441
    %v444 = vrot.slane %v425, 3
    %v445 = vsel %vm123, %v444, %v443
    %v446 = vrot.slane %v426, 2
    %v447 = vsel %vm126, %v446, %v445
    %v448 = vrot.slane %v427, 1
    %v449 = vsel %vm129, %v448, %v447
    %453 = vst [vmem:[#allocation1] ss:$2 sm:$0xff] %v417
    %s454 = scalar_lea.vmem [#allocation1], 16
    %455 = vst [vmem:[%s454] ss:$2 sm:$0xff] %v418
    %s456 = scalar_lea.vmem [#allocation1], 32
    %457 = vst [vmem:[%s456] ss:$2 sm:$0xff] %v419
    %v458 = vld.sshfl [vmem:[#allocation1] sm:$0xff pattern:$0x75316420]
    %v459 = vld.sshfl [vmem:[#allocation1 + $0x8] sm:$0xff pattern:$0x75316420]
    %v460 = vld.sshfl [vmem:[#allocation1 + $0x10] sm:$0xff pattern:$0x75316420]
    %v461 = vld.sshfl [vmem:[#allocation1 + $0x18] sm:$0xff pattern:$0x75316420]
    %v462 = vld.sshfl [vmem:[#allocation1 + $0x20] sm:$0xff pattern:$0x75316420]
    %463 = vrot.lane.b32.xlu0 %v458, 15
    %v464 = vpop.permute.xlu0 %463
    %465 = vrot.lane.b32.xlu0 %v459, 15
    %v466 = vpop.permute.xlu0 %465
    %467 = vrot.lane.b32.xlu0 %v460, 15
    %v468 = vpop.permute.xlu0 %467
    %469 = vrot.lane.b32.xlu0 %v461, 15
    %v470 = vpop.permute.xlu0 %469
    %471 = vrot.lane.b32.xlu0 %v462, 15
    %v472 = vpop.permute.xlu0 %471
    %vm473 = vcmask 121856
    %v474 = vsel %vm473, %v464, %v466
    %v475 = vsel %vm473, %v466, %v468
    %v476 = vsel %vm473, %v468, %v470
    %v477 = vsel %vm473, %v470, %v472
    %v478 = vsel %vm159, %v449, 0
    %v480 = vsel %vm40, %v474, 0
    %v482 = vsel %vm40, %v475, 0
    %v484 = vsel %vm40, %v476, 0
    %v486 = vsel %vm40, %v477, 0
    %488 = vmatpush.msra.mxu0 0.0
    %489 = vmatpush.msra.mxu0 0.0
    %490 = vmatpush.msra.mxu0 0.0
    %491 = vmatpush.msra.mxu0 0.0
    %492 = vmatpush.msra.mxu0 0.0
    %493 = vmatpush.msra.mxu0 0.0
    %494 = vmatpush.msra.mxu0 0.0
    %495 = vmatpush.msra.mxu0 0.0
    %496 = vmatpush.msra.mxu0 0.0
    %497 = vmatpush.msra.mxu0 0.0
    %498 = vmatpush.msra.mxu0 0.0
    %499 = vmatpush.msra.mxu0 0.0
    %500 = vmatpush.msra.mxu0 0.0
    %501 = vmatpush.msra.mxu0 0.0
    %502 = vmatpush.msra.mxu0 0.0
    %503 = vmatpush.msra.mxu0 %v480
    %504 = vmatmul.f32.gmra.mxu0 %v478
    %v505 = vpop.f32.mrf.mxu0
    %v506 = vadd.f32 0.0, %v505
    %507 = vdwg.mxu0
    %508 = vmatpush.msra.mxu0 0.0
    %509 = vmatpush.msra.mxu0 0.0
    %510 = vmatpush.msra.mxu0 0.0
    %511 = vmatpush.msra.mxu0 0.0
    %512 = vmatpush.msra.mxu0 0.0
    %513 = vmatpush.msra.mxu0 0.0
    %514 = vmatpush.msra.mxu0 0.0
    %515 = vmatpush.msra.mxu0 0.0
    %516 = vmatpush.msra.mxu0 0.0
    %517 = vmatpush.msra.mxu0 0.0
    %518 = vmatpush.msra.mxu0 0.0
    %519 = vmatpush.msra.mxu0 0.0
    %520 = vmatpush.msra.mxu0 0.0
    %521 = vmatpush.msra.mxu0 0.0
    %522 = vmatpush.msra.mxu0 0.0
    %523 = vmatpush.msra.mxu0 %v482
    %524 = vmatmul.f32.gmra.mxu0 %v478
    %v525 = vpop.f32.mrf.mxu0
    %v526 = vadd.f32 0.0, %v525
    %527 = vdwg.mxu0
    %528 = vmatpush.msra.mxu0 0.0
    %529 = vmatpush.msra.mxu0 0.0
    %530 = vmatpush.msra.mxu0 0.0
    %531 = vmatpush.msra.mxu0 0.0
    %532 = vmatpush.msra.mxu0 0.0
    %533 = vmatpush.msra.mxu0 0.0
    %534 = vmatpush.msra.mxu0 0.0
    %535 = vmatpush.msra.mxu0 0.0
    %536 = vmatpush.msra.mxu0 0.0
    %537 = vmatpush.msra.mxu0 0.0
    %538 = vmatpush.msra.mxu0 0.0
    %539 = vmatpush.msra.mxu0 0.0
    %540 = vmatpush.msra.mxu0 0.0
    %541 = vmatpush.msra.mxu0 0.0
    %542 = vmatpush.msra.mxu0 0.0
    %543 = vmatpush.msra.mxu0 %v484
    %544 = vmatmul.f32.gmra.mxu0 %v478
    %v545 = vpop.f32.mrf.mxu0
    %v546 = vadd.f32 0.0, %v545
    %547 = vdwg.mxu0
    %548 = vmatpush.msra.mxu0 0.0
    %549 = vmatpush.msra.mxu0 0.0
    %550 = vmatpush.msra.mxu0 0.0
    %551 = vmatpush.msra.mxu0 0.0
    %552 = vmatpush.msra.mxu0 0.0
    %553 = vmatpush.msra.mxu0 0.0
    %554 = vmatpush.msra.mxu0 0.0
    %555 = vmatpush.msra.mxu0 0.0
    %556 = vmatpush.msra.mxu0 0.0
    %557 = vmatpush.msra.mxu0 0.0
    %558 = vmatpush.msra.mxu0 0.0
    %559 = vmatpush.msra.mxu0 0.0
    %560 = vmatpush.msra.mxu0 0.0
    %561 = vmatpush.msra.mxu0 0.0
    %562 = vmatpush.msra.mxu0 0.0
    %563 = vmatpush.msra.mxu0 %v486
    %564 = vmatmul.f32.gmra.mxu0 %v478
    %v565 = vpop.f32.mrf.mxu0
    %v566 = vadd.f32 0.0, %v565
    %567 = vdwg.mxu0
    %v568 = vadd.f32 %v328, %v506
    %v569 = vadd.f32 %v348, %v526
    %v570 = vadd.f32 %v368, %v546
    %v571 = vadd.f32 %v388, %v566
    %v572 = vld [vmem:[#allocation2] sm:$0xff]
    %v573 = vld [vmem:[#allocation2 + $0x8] sm:$0xff]
    %v574 = vld [vmem:[#allocation2 + $0x10] sm:$0xf]
    %s575 = scalar_lea.vmem %s2, 12
    %v576 = vld [vmem:[%s575] sm:$0xf]
    %v578 = vperm.slane %v576, 0
    %v579 = vperm.slane %v576, 1
    %v580 = vperm.slane %v576, 2
    %v581 = vperm.slane %v576, 3
    %v582 = vrot.slane %v579, 4
    %v583 = vrot.slane %v581, 4
    %v584 = vsel %vm40, %v578, %v582
    %v585 = vsel %vm40, %v580, %v583
    %586 = vrot.lane.b32.xlu0 %v584, 127
    %v587 = vpop.permute.xlu0 %586
    %588 = vrot.lane.b32.xlu0 %v585, 127
    %v589 = vpop.permute.xlu0 %588
    %v590 = vrot.slane %v587, 4
    %v591 = vrot.slane %v589, 4
    %vm592 = vcmask 1039360
    %v593 = vsel %vm592, %v590, %v587
    %v594 = vsel %vm40, %v590, %v591
    %v595 = vsel %vm592, %v594, %v589
    %v599 = vmul.f32 %v572, %v593
    %v600 = vmul.f32 %v573, %v595
    %v601 = vmul.f32 %v574, %v591
    %v602 = vld [vmem:[%s1 + $0x3] sm:$0x1]
    %v603 = vld [vmem:[%s1 + $0x13] sm:$0x1]
    %v604 = vld [vmem:[%s1 + $0x23] sm:$0x1]
    %v605 = vld [vmem:[%s1 + $0x33] sm:$0x1]
    %v606 = vld [vmem:[%s1 + $0x43] sm:$0x1]
    %v607 = vld [vmem:[%s1 + $0x53] sm:$0x1]
    %v608 = vld [vmem:[%s1 + $0x63] sm:$0x1]
    %v609 = vld [vmem:[%s1 + $0x73] sm:$0x1]
    %v618 = vrot.slane %v603, 7
    %v619 = vsel %vm111, %v618, %v602
    %v620 = vrot.slane %v604, 6
    %v621 = vsel %vm114, %v620, %v619
    %v622 = vrot.slane %v605, 5
    %v623 = vsel %vm117, %v622, %v621
    %v624 = vrot.slane %v606, 4
    %v625 = vsel %vm120, %v624, %v623
    %v626 = vrot.slane %v607, 3
    %v627 = vsel %vm123, %v626, %v625
    %v628 = vrot.slane %v608, 2
    %v629 = vsel %vm126, %v628, %v627
    %v630 = vrot.slane %v609, 1
    %v631 = vsel %vm129, %v630, %v629
    %635 = vst [vmem:[#allocation1] ss:$2 sm:$0xff] %v599
    %s636 = scalar_lea.vmem [#allocation1], 16
    %637 = vst [vmem:[%s636] ss:$2 sm:$0xff] %v600
    %s638 = scalar_lea.vmem [#allocation1], 32
    %639 = vst [vmem:[%s638] ss:$2 sm:$0xff] %v601
    %v640 = vld.sshfl [vmem:[#allocation1] sm:$0xff pattern:$0x75316420]
    %v641 = vld.sshfl [vmem:[#allocation1 + $0x8] sm:$0xff pattern:$0x75316420]
    %v642 = vld.sshfl [vmem:[#allocation1 + $0x10] sm:$0xff pattern:$0x75316420]
    %v643 = vld.sshfl [vmem:[#allocation1 + $0x18] sm:$0xff pattern:$0x75316420]
    %v644 = vld.sshfl [vmem:[#allocation1 + $0x20] sm:$0xff pattern:$0x75316420]
    %645 = vrot.lane.b32.xlu0 %v640, 1
    %v646 = vpop.permute.xlu0 %645
    %647 = vrot.lane.b32.xlu0 %v641, 1
    %v648 = vpop.permute.xlu0 %647
    %649 = vrot.lane.b32.xlu0 %v642, 1
    %v650 = vpop.permute.xlu0 %649
    %651 = vrot.lane.b32.xlu0 %v643, 1
    %v652 = vpop.permute.xlu0 %651
    %653 = vrot.lane.b32.xlu0 %v644, 1
    %v654 = vpop.permute.xlu0 %653
    %vm655 = vcmask 7168
    %v656 = vsel %vm655, %v646, %v648
    %v657 = vsel %vm655, %v648, %v650
    %v658 = vsel %vm655, %v650, %v652
    %v659 = vsel %vm655, %v652, %v654
    %v660 = vsel %vm159, %v631, 0
    %v662 = vsel %vm40, %v656, 0
    %v664 = vsel %vm40, %v657, 0
    %v666 = vsel %vm40, %v658, 0
    %v668 = vsel %vm40, %v659, 0
    %670 = vmatpush.msra.mxu0 0.0
    %671 = vmatpush.msra.mxu0 0.0
    %672 = vmatpush.msra.mxu0 0.0
    %673 = vmatpush.msra.mxu0 0.0
    %674 = vmatpush.msra.mxu0 0.0
    %675 = vmatpush.msra.mxu0 0.0
    %676 = vmatpush.msra.mxu0 0.0
    %677 = vmatpush.msra.mxu0 0.0
    %678 = vmatpush.msra.mxu0 0.0
    %679 = vmatpush.msra.mxu0 0.0
    %680 = vmatpush.msra.mxu0 0.0
    %681 = vmatpush.msra.mxu0 0.0
    %682 = vmatpush.msra.mxu0 0.0
    %683 = vmatpush.msra.mxu0 0.0
    %684 = vmatpush.msra.mxu0 0.0
    %685 = vmatpush.msra.mxu0 %v662
    %686 = vmatmul.f32.gmra.mxu0 %v660
    %v687 = vpop.f32.mrf.mxu0
    %v688 = vadd.f32 0.0, %v687
    %689 = vdwg.mxu0
    %690 = vmatpush.msra.mxu0 0.0
    %691 = vmatpush.msra.mxu0 0.0
    %692 = vmatpush.msra.mxu0 0.0
    %693 = vmatpush.msra.mxu0 0.0
    %694 = vmatpush.msra.mxu0 0.0
    %695 = vmatpush.msra.mxu0 0.0
    %696 = vmatpush.msra.mxu0 0.0
    %697 = vmatpush.msra.mxu0 0.0
    %698 = vmatpush.msra.mxu0 0.0
    %699 = vmatpush.msra.mxu0 0.0
    %700 = vmatpush.msra.mxu0 0.0
    %701 = vmatpush.msra.mxu0 0.0
    %702 = vmatpush.msra.mxu0 0.0
    %703 = vmatpush.msra.mxu0 0.0
    %704 = vmatpush.msra.mxu0 0.0
    %705 = vmatpush.msra.mxu0 %v664
    %706 = vmatmul.f32.gmra.mxu0 %v660
    %v707 = vpop.f32.mrf.mxu0
    %v708 = vadd.f32 0.0, %v707
    %709 = vdwg.mxu0
    %710 = vmatpush.msra.mxu0 0.0
    %711 = vmatpush.msra.mxu0 0.0
    %712 = vmatpush.msra.mxu0 0.0
    %713 = vmatpush.msra.mxu0 0.0
    %714 = vmatpush.msra.mxu0 0.0
    %715 = vmatpush.msra.mxu0 0.0
    %716 = vmatpush.msra.mxu0 0.0
    %717 = vmatpush.msra.mxu0 0.0
    %718 = vmatpush.msra.mxu0 0.0
    %719 = vmatpush.msra.mxu0 0.0
    %720 = vmatpush.msra.mxu0 0.0
    %721 = vmatpush.msra.mxu0 0.0
    %722 = vmatpush.msra.mxu0 0.0
    %723 = vmatpush.msra.mxu0 0.0
    %724 = vmatpush.msra.mxu0 0.0
    %725 = vmatpush.msra.mxu0 %v666
    %726 = vmatmul.f32.gmra.mxu0 %v660
    %v727 = vpop.f32.mrf.mxu0
    %v728 = vadd.f32 0.0, %v727
    %729 = vdwg.mxu0
    %730 = vmatpush.msra.mxu0 0.0
    %731 = vmatpush.msra.mxu0 0.0
    %732 = vmatpush.msra.mxu0 0.0
    %733 = vmatpush.msra.mxu0 0.0
    %734 = vmatpush.msra.mxu0 0.0
    %735 = vmatpush.msra.mxu0 0.0
    %736 = vmatpush.msra.mxu0 0.0
    %737 = vmatpush.msra.mxu0 0.0
    %738 = vmatpush.msra.mxu0 0.0
    %739 = vmatpush.msra.mxu0 0.0
    %740 = vmatpush.msra.mxu0 0.0
    %741 = vmatpush.msra.mxu0 0.0
    %742 = vmatpush.msra.mxu0 0.0
    %743 = vmatpush.msra.mxu0 0.0
    %744 = vmatpush.msra.mxu0 0.0
    %745 = vmatpush.msra.mxu0 %v668
    %746 = vmatmul.f32.gmra.mxu0 %v660
    %v747 = vpop.f32.mrf.mxu0
    %v748 = vadd.f32 0.0, %v747
    %749 = vdwg.mxu0
    %v750 = vadd.f32 %v568, %v688
    %v751 = vadd.f32 %v569, %v708
    %v752 = vadd.f32 %v570, %v728
    %v753 = vadd.f32 %v571, %v748
    %v754 = vld [vmem:[%s1 + $0x4] sm:$0x1]
    %v755 = vld [vmem:[%s1 + $0x14] sm:$0x1]
    %v756 = vld [vmem:[%s1 + $0x24] sm:$0x1]
    %v757 = vld [vmem:[%s1 + $0x34] sm:$0x1]
    %v758 = vld [vmem:[%s1 + $0x44] sm:$0x1]
    %v759 = vld [vmem:[%s1 + $0x54] sm:$0x1]
    %v760 = vld [vmem:[%s1 + $0x64] sm:$0x1]
    %v761 = vld [vmem:[%s1 + $0x74] sm:$0x1]
    %v770 = vrot.slane %v755, 7
    %v771 = vsel %vm111, %v770, %v754
    %v772 = vrot.slane %v756, 6
    %v773 = vsel %vm114, %v772, %v771
    %v774 = vrot.slane %v757, 5
    %v775 = vsel %vm117, %v774, %v773
    %v776 = vrot.slane %v758, 4
    %v777 = vsel %vm120, %v776, %v775
    %v778 = vrot.slane %v759, 3
    %v779 = vsel %vm123, %v778, %v777
    %v780 = vrot.slane %v760, 2
    %v781 = vsel %vm126, %v780, %v779
    %v782 = vrot.slane %v761, 1
    %v783 = vsel %vm129, %v782, %v781
    %786 = vst [vmem:[#allocation1] ss:$2 sm:$0xff] %v23
    %s787 = scalar_lea.vmem [#allocation1], 16
    %788 = vst [vmem:[%s787] ss:$2 sm:$0xff] %v24
    %v789 = vld.sshfl [vmem:[#allocation1] sm:$0xff pattern:$0x75316420]
    %v790 = vld.sshfl [vmem:[#allocation1 + $0x8] sm:$0xff pattern:$0x75316420]
    %v791 = vld.sshfl [vmem:[#allocation1 + $0x10] sm:$0xff pattern:$0x75316420]
    %v792 = vld.sshfl [vmem:[#allocation1 + $0x18] sm:$0xff pattern:$0x75316420]
    %v793 = vsel %vm159, %v783, 0
    %v795 = vsel %vm40, %v789, 0
    %v797 = vsel %vm40, %v790, 0
    %v799 = vsel %vm40, %v791, 0
    %v801 = vsel %vm40, %v792, 0
    %803 = vmatpush.msra.mxu0 0.0
    %804 = vmatpush.msra.mxu0 0.0
    %805 = vmatpush.msra.mxu0 0.0
    %806 = vmatpush.msra.mxu0 0.0
    %807 = vmatpush.msra.mxu0 0.0
    %808 = vmatpush.msra.mxu0 0.0
    %809 = vmatpush.msra.mxu0 0.0
    %810 = vmatpush.msra.mxu0 0.0
    %811 = vmatpush.msra.mxu0 0.0
    %812 = vmatpush.msra.mxu0 0.0
    %813 = vmatpush.msra.mxu0 0.0
    %814 = vmatpush.msra.mxu0 0.0
    %815 = vmatpush.msra.mxu0 0.0
    %816 = vmatpush.msra.mxu0 0.0
    %817 = vmatpush.msra.mxu0 0.0
    %818 = vmatpush.msra.mxu0 %v795
    %819 = vmatmul.f32.gmra.mxu0 %v793
    %v820 = vpop.f32.mrf.mxu0
    %v821 = vadd.f32 0.0, %v820
    %822 = vdwg.mxu0
    %823 = vmatpush.msra.mxu0 0.0
    %824 = vmatpush.msra.mxu0 0.0
    %825 = vmatpush.msra.mxu0 0.0
    %826 = vmatpush.msra.mxu0 0.0
    %827 = vmatpush.msra.mxu0 0.0
    %828 = vmatpush.msra.mxu0 0.0
    %829 = vmatpush.msra.mxu0 0.0
    %830 = vmatpush.msra.mxu0 0.0
    %831 = vmatpush.msra.mxu0 0.0
    %832 = vmatpush.msra.mxu0 0.0
    %833 = vmatpush.msra.mxu0 0.0
    %834 = vmatpush.msra.mxu0 0.0
    %835 = vmatpush.msra.mxu0 0.0
    %836 = vmatpush.msra.mxu0 0.0
    %837 = vmatpush.msra.mxu0 0.0
    %838 = vmatpush.msra.mxu0 %v797
    %839 = vmatmul.f32.gmra.mxu0 %v793
    %v840 = vpop.f32.mrf.mxu0
    %v841 = vadd.f32 0.0, %v840
    %842 = vdwg.mxu0
    %843 = vmatpush.msra.mxu0 0.0
    %844 = vmatpush.msra.mxu0 0.0
    %845 = vmatpush.msra.mxu0 0.0
    %846 = vmatpush.msra.mxu0 0.0
    %847 = vmatpush.msra.mxu0 0.0
    %848 = vmatpush.msra.mxu0 0.0
    %849 = vmatpush.msra.mxu0 0.0
    %850 = vmatpush.msra.mxu0 0.0
    %851 = vmatpush.msra.mxu0 0.0
    %852 = vmatpush.msra.mxu0 0.0
    %853 = vmatpush.msra.mxu0 0.0
    %854 = vmatpush.msra.mxu0 0.0
    %855 = vmatpush.msra.mxu0 0.0
    %856 = vmatpush.msra.mxu0 0.0
    %857 = vmatpush.msra.mxu0 0.0
    %858 = vmatpush.msra.mxu0 %v799
    %859 = vmatmul.f32.gmra.mxu0 %v793
    %v860 = vpop.f32.mrf.mxu0
    %v861 = vadd.f32 0.0, %v860
    %862 = vdwg.mxu0
    %863 = vmatpush.msra.mxu0 0.0
    %864 = vmatpush.msra.mxu0 0.0
    %865 = vmatpush.msra.mxu0 0.0
    %866 = vmatpush.msra.mxu0 0.0
    %867 = vmatpush.msra.mxu0 0.0
    %868 = vmatpush.msra.mxu0 0.0
    %869 = vmatpush.msra.mxu0 0.0
    %870 = vmatpush.msra.mxu0 0.0
    %871 = vmatpush.msra.mxu0 0.0
    %872 = vmatpush.msra.mxu0 0.0
    %873 = vmatpush.msra.mxu0 0.0
    %874 = vmatpush.msra.mxu0 0.0
    %875 = vmatpush.msra.mxu0 0.0
    %876 = vmatpush.msra.mxu0 0.0
    %877 = vmatpush.msra.mxu0 0.0
    %878 = vmatpush.msra.mxu0 %v801
    %879 = vmatmul.f32.gmra.mxu0 %v793
    %v880 = vpop.f32.mrf.mxu0
    %v881 = vadd.f32 0.0, %v880
    %882 = vdwg.mxu0
    %v883 = vadd.f32 %v750, %v821
    %v884 = vadd.f32 %v751, %v841
    %v885 = vadd.f32 %v752, %v861
    %v886 = vadd.f32 %v753, %v881
    %v887 = vld [vmem:[#allocation2 + $0x4] sm:$0xff]
    %v888 = vld [vmem:[#allocation2 + $0xc] sm:$0xff]
    %v889 = vld [vmem:[#allocation2 + $0x14] sm:$0xf]
    %s890 = scalar_lea.vmem %s2, 20
    %v891 = vld [vmem:[%s890] sm:$0xf]
    %v893 = vperm.slane %v891, 0
    %v894 = vperm.slane %v891, 1
    %v895 = vperm.slane %v891, 2
    %v896 = vperm.slane %v891, 3
    %v897 = vrot.slane %v894, 4
    %v898 = vrot.slane %v896, 4
    %v899 = vsel %vm40, %v893, %v897
    %v900 = vsel %vm40, %v895, %v898
    %901 = vrot.lane.b32.xlu0 %v899, 1
    %v902 = vpop.permute.xlu0 %901
    %903 = vrot.lane.b32.xlu0 %v900, 1
    %v904 = vpop.permute.xlu0 %903
    %v905 = vrot.slane %v902, 4
    %v906 = vrot.slane %v904, 4
    %v907 = vsel %vm655, %v905, %v902
    %v908 = vsel %vm40, %v905, %v906
    %v909 = vsel %vm655, %v908, %v904
    %v913 = vmul.f32 %v887, %v907
    %v914 = vmul.f32 %v888, %v909
    %v915 = vmul.f32 %v889, %v906
    %v916 = vld [vmem:[%s1 + $0x5] sm:$0x1]
    %v917 = vld [vmem:[%s1 + $0x15] sm:$0x1]
    %v918 = vld [vmem:[%s1 + $0x25] sm:$0x1]
    %v919 = vld [vmem:[%s1 + $0x35] sm:$0x1]
    %v920 = vld [vmem:[%s1 + $0x45] sm:$0x1]
    %v921 = vld [vmem:[%s1 + $0x55] sm:$0x1]
    %v922 = vld [vmem:[%s1 + $0x65] sm:$0x1]
    %v923 = vld [vmem:[%s1 + $0x75] sm:$0x1]
    %v932 = vrot.slane %v917, 7
    %v933 = vsel %vm111, %v932, %v916
    %v934 = vrot.slane %v918, 6
    %v935 = vsel %vm114, %v934, %v933
    %v936 = vrot.slane %v919, 5
    %v937 = vsel %vm117, %v936, %v935
    %v938 = vrot.slane %v920, 4
    %v939 = vsel %vm120, %v938, %v937
    %v940 = vrot.slane %v921, 3
    %v941 = vsel %vm123, %v940, %v939
    %v942 = vrot.slane %v922, 2
    %v943 = vsel %vm126, %v942, %v941
    %v944 = vrot.slane %v923, 1
    %v945 = vsel %vm129, %v944, %v943
    %949 = vst [vmem:[#allocation1] ss:$2 sm:$0xff] %v913
    %s950 = scalar_lea.vmem [#allocation1], 16
    %951 = vst [vmem:[%s950] ss:$2 sm:$0xff] %v914
    %s952 = scalar_lea.vmem [#allocation1], 32
    %953 = vst [vmem:[%s952] ss:$2 sm:$0xff] %v915
    %v954 = vld.sshfl [vmem:[#allocation1] sm:$0xff pattern:$0x75316420]
    %v955 = vld.sshfl [vmem:[#allocation1 + $0x8] sm:$0xff pattern:$0x75316420]
    %v956 = vld.sshfl [vmem:[#allocation1 + $0x10] sm:$0xff pattern:$0x75316420]
    %v957 = vld.sshfl [vmem:[#allocation1 + $0x18] sm:$0xff pattern:$0x75316420]
    %v958 = vld.sshfl [vmem:[#allocation1 + $0x20] sm:$0xff pattern:$0x75316420]
    %959 = vrot.lane.b32.xlu0 %v954, 127
    %v960 = vpop.permute.xlu0 %959
    %961 = vrot.lane.b32.xlu0 %v955, 127
    %v962 = vpop.permute.xlu0 %961
    %963 = vrot.lane.b32.xlu0 %v956, 127
    %v964 = vpop.permute.xlu0 %963
    %965 = vrot.lane.b32.xlu0 %v957, 127
    %v966 = vpop.permute.xlu0 %965
    %967 = vrot.lane.b32.xlu0 %v958, 127
    %v968 = vpop.permute.xlu0 %967
    %v969 = vsel %vm592, %v960, %v962
    %v970 = vsel %vm592, %v962, %v964
    %v971 = vsel %vm592, %v964, %v966
    %v972 = vsel %vm592, %v966, %v968
    %v973 = vsel %vm159, %v945, 0
    %v975 = vsel %vm40, %v969, 0
    %v977 = vsel %vm40, %v970, 0
    %v979 = vsel %vm40, %v971, 0
    %v981 = vsel %vm40, %v972, 0
    %983 = vmatpush.msra.mxu0 0.0
    %984 = vmatpush.msra.mxu0 0.0
    %985 = vmatpush.msra.mxu0 0.0
    %986 = vmatpush.msra.mxu0 0.0
    %987 = vmatpush.msra.mxu0 0.0
    %988 = vmatpush.msra.mxu0 0.0
    %989 = vmatpush.msra.mxu0 0.0
    %990 = vmatpush.msra.mxu0 0.0
    %991 = vmatpush.msra.mxu0 0.0
    %992 = vmatpush.msra.mxu0 0.0
    %993 = vmatpush.msra.mxu0 0.0
    %994 = vmatpush.msra.mxu0 0.0
    %995 = vmatpush.msra.mxu0 0.0
    %996 = vmatpush.msra.mxu0 0.0
    %997 = vmatpush.msra.mxu0 0.0
    %998 = vmatpush.msra.mxu0 %v975
    %999 = vmatmul.f32.gmra.mxu0 %v973
    %v1000 = vpop.f32.mrf.mxu0
    %v1001 = vadd.f32 0.0, %v1000
    %1002 = vdwg.mxu0
    %1003 = vmatpush.msra.mxu0 0.0
    %1004 = vmatpush.msra.mxu0 0.0
    %1005 = vmatpush.msra.mxu0 0.0
    %1006 = vmatpush.msra.mxu0 0.0
    %1007 = vmatpush.msra.mxu0 0.0
    %1008 = vmatpush.msra.mxu0 0.0
    %1009 = vmatpush.msra.mxu0 0.0
    %1010 = vmatpush.msra.mxu0 0.0
    %1011 = vmatpush.msra.mxu0 0.0
    %1012 = vmatpush.msra.mxu0 0.0
    %1013 = vmatpush.msra.mxu0 0.0
    %1014 = vmatpush.msra.mxu0 0.0
    %1015 = vmatpush.msra.mxu0 0.0
    %1016 = vmatpush.msra.mxu0 0.0
    %1017 = vmatpush.msra.mxu0 0.0
    %1018 = vmatpush.msra.mxu0 %v977
    %1019 = vmatmul.f32.gmra.mxu0 %v973
    %v1020 = vpop.f32.mrf.mxu0
    %v1021 = vadd.f32 0.0, %v1020
    %1022 = vdwg.mxu0
    %1023 = vmatpush.msra.mxu0 0.0
    %1024 = vmatpush.msra.mxu0 0.0
    %1025 = vmatpush.msra.mxu0 0.0
    %1026 = vmatpush.msra.mxu0 0.0
    %1027 = vmatpush.msra.mxu0 0.0
    %1028 = vmatpush.msra.mxu0 0.0
    %1029 = vmatpush.msra.mxu0 0.0
    %1030 = vmatpush.msra.mxu0 0.0
    %1031 = vmatpush.msra.mxu0 0.0
    %1032 = vmatpush.msra.mxu0 0.0
    %1033 = vmatpush.msra.mxu0 0.0
    %1034 = vmatpush.msra.mxu0 0.0
    %1035 = vmatpush.msra.mxu0 0.0
    %1036 = vmatpush.msra.mxu0 0.0
    %1037 = vmatpush.msra.mxu0 0.0
    %1038 = vmatpush.msra.mxu0 %v979
    %1039 = vmatmul.f32.gmra.mxu0 %v973
    %v1040 = vpop.f32.mrf.mxu0
    %v1041 = vadd.f32 0.0, %v1040
    %1042 = vdwg.mxu0
    %1043 = vmatpush.msra.mxu0 0.0
    %1044 = vmatpush.msra.mxu0 0.0
    %1045 = vmatpush.msra.mxu0 0.0
    %1046 = vmatpush.msra.mxu0 0.0
    %1047 = vmatpush.msra.mxu0 0.0
    %1048 = vmatpush.msra.mxu0 0.0
    %1049 = vmatpush.msra.mxu0 0.0
    %1050 = vmatpush.msra.mxu0 0.0
    %1051 = vmatpush.msra.mxu0 0.0
    %1052 = vmatpush.msra.mxu0 0.0
    %1053 = vmatpush.msra.mxu0 0.0
    %1054 = vmatpush.msra.mxu0 0.0
    %1055 = vmatpush.msra.mxu0 0.0
    %1056 = vmatpush.msra.mxu0 0.0
    %1057 = vmatpush.msra.mxu0 0.0
    %1058 = vmatpush.msra.mxu0 %v981
    %1059 = vmatmul.f32.gmra.mxu0 %v973
    %v1060 = vpop.f32.mrf.mxu0
    %v1061 = vadd.f32 0.0, %v1060
    %1062 = vdwg.mxu0
    %v1063 = vadd.f32 %v883, %v1001
    %v1064 = vadd.f32 %v884, %v1021
    %v1065 = vadd.f32 %v885, %v1041
    %v1066 = vadd.f32 %v886, %v1061
    %v1067 = vld [vmem:[#allocation2 + $0x4] sm:$0xff]
    %v1068 = vld [vmem:[#allocation2 + $0xc] sm:$0xff]
    %v1069 = vld [vmem:[#allocation2 + $0x14] sm:$0xf]
    %s1070 = scalar_lea.vmem %s2, 24
    %v1071 = vld [vmem:[%s1070] sm:$0xf]
    %v1073 = vperm.slane %v1071, 0
    %v1074 = vperm.slane %v1071, 1
    %v1075 = vperm.slane %v1071, 2
    %v1076 = vperm.slane %v1071, 3
    %v1077 = vrot.slane %v1074, 4
    %v1078 = vrot.slane %v1076, 4
    %v1079 = vsel %vm40, %v1073, %v1077
    %v1080 = vsel %vm40, %v1075, %v1078
    %1081 = vrot.lane.b32.xlu0 %v1079, 15
    %v1082 = vpop.permute.xlu0 %1081
    %1083 = vrot.lane.b32.xlu0 %v1080, 15
    %v1084 = vpop.permute.xlu0 %1083
    %v1085 = vrot.slane %v1082, 4
    %v1086 = vrot.slane %v1084, 4
    %v1087 = vsel %vm473, %v1085, %v1082
    %v1088 = vsel %vm40, %v1085, %v1086
    %v1089 = vsel %vm473, %v1088, %v1084
    %v1093 = vmul.f32 %v1067, %v1087
    %v1094 = vmul.f32 %v1068, %v1089
    %v1095 = vmul.f32 %v1069, %v1086
    %v1096 = vld [vmem:[%s1 + $0x6] sm:$0x1]
    %v1097 = vld [vmem:[%s1 + $0x16] sm:$0x1]
    %v1098 = vld [vmem:[%s1 + $0x26] sm:$0x1]
    %v1099 = vld [vmem:[%s1 + $0x36] sm:$0x1]
    %v1100 = vld [vmem:[%s1 + $0x46] sm:$0x1]
    %v1101 = vld [vmem:[%s1 + $0x56] sm:$0x1]
    %v1102 = vld [vmem:[%s1 + $0x66] sm:$0x1]
    %v1103 = vld [vmem:[%s1 + $0x76] sm:$0x1]
    %v1112 = vrot.slane %v1097, 7
    %v1113 = vsel %vm111, %v1112, %v1096
    %v1114 = vrot.slane %v1098, 6
    %v1115 = vsel %vm114, %v1114, %v1113
    %v1116 = vrot.slane %v1099, 5
    %v1117 = vsel %vm117, %v1116, %v1115
    %v1118 = vrot.slane %v1100, 4
    %v1119 = vsel %vm120, %v1118, %v1117
    %v1120 = vrot.slane %v1101, 3
    %v1121 = vsel %vm123, %v1120, %v1119
    %v1122 = vrot.slane %v1102, 2
    %v1123 = vsel %vm126, %v1122, %v1121
    %v1124 = vrot.slane %v1103, 1
    %v1125 = vsel %vm129, %v1124, %v1123
    %1129 = vst [vmem:[#allocation1] ss:$2 sm:$0xff] %v1093
    %s1130 = scalar_lea.vmem [#allocation1], 16
    %1131 = vst [vmem:[%s1130] ss:$2 sm:$0xff] %v1094
    %s1132 = scalar_lea.vmem [#allocation1], 32
    %1133 = vst [vmem:[%s1132] ss:$2 sm:$0xff] %v1095
    %v1134 = vld.sshfl [vmem:[#allocation1] sm:$0xff pattern:$0x75316420]
    %v1135 = vld.sshfl [vmem:[#allocation1 + $0x8] sm:$0xff pattern:$0x75316420]
    %v1136 = vld.sshfl [vmem:[#allocation1 + $0x10] sm:$0xff pattern:$0x75316420]
    %v1137 = vld.sshfl [vmem:[#allocation1 + $0x18] sm:$0xff pattern:$0x75316420]
    %v1138 = vld.sshfl [vmem:[#allocation1 + $0x20] sm:$0xff pattern:$0x75316420]
    %1139 = vrot.lane.b32.xlu0 %v1134, 113
    %v1140 = vpop.permute.xlu0 %1139
    %1141 = vrot.lane.b32.xlu0 %v1135, 113
    %v1142 = vpop.permute.xlu0 %1141
    %1143 = vrot.lane.b32.xlu0 %v1136, 113
    %v1144 = vpop.permute.xlu0 %1143
    %1145 = vrot.lane.b32.xlu0 %v1137, 113
    %v1146 = vpop.permute.xlu0 %1145
    %1147 = vrot.lane.b32.xlu0 %v1138, 113
    %v1148 = vpop.permute.xlu0 %1147
    %v1149 = vsel %vm410, %v1140, %v1142
    %v1150 = vsel %vm410, %v1142, %v1144
    %v1151 = vsel %vm410, %v1144, %v1146
    %v1152 = vsel %vm410, %v1146, %v1148
    %v1153 = vsel %vm159, %v1125, 0
    %v1155 = vsel %vm40, %v1149, 0
    %v1157 = vsel %vm40, %v1150, 0
    %v1159 = vsel %vm40, %v1151, 0
    %v1161 = vsel %vm40, %v1152, 0
    %1163 = vmatpush.msra.mxu0 0.0
    %1164 = vmatpush.msra.mxu0 0.0
    %1165 = vmatpush.msra.mxu0 0.0
    %1166 = vmatpush.msra.mxu0 0.0
    %1167 = vmatpush.msra.mxu0 0.0
    %1168 = vmatpush.msra.mxu0 0.0
    %1169 = vmatpush.msra.mxu0 0.0
    %1170 = vmatpush.msra.mxu0 0.0
    %1171 = vmatpush.msra.mxu0 0.0
    %1172 = vmatpush.msra.mxu0 0.0
    %1173 = vmatpush.msra.mxu0 0.0
    %1174 = vmatpush.msra.mxu0 0.0
    %1175 = vmatpush.msra.mxu0 0.0
    %1176 = vmatpush.msra.mxu0 0.0
    %1177 = vmatpush.msra.mxu0 0.0
    %1178 = vmatpush.msra.mxu0 %v1155
    %1179 = vmatmul.f32.gmra.mxu0 %v1153
    %v1180 = vpop.f32.mrf.mxu0
    %v1181 = vadd.f32 0.0, %v1180
    %1182 = vdwg.mxu0
    %1183 = vmatpush.msra.mxu0 0.0
    %1184 = vmatpush.msra.mxu0 0.0
    %1185 = vmatpush.msra.mxu0 0.0
    %1186 = vmatpush.msra.mxu0 0.0
    %1187 = vmatpush.msra.mxu0 0.0
    %1188 = vmatpush.msra.mxu0 0.0
    %1189 = vmatpush.msra.mxu0 0.0
    %1190 = vmatpush.msra.mxu0 0.0
    %1191 = vmatpush.msra.mxu0 0.0
    %1192 = vmatpush.msra.mxu0 0.0
    %1193 = vmatpush.msra.mxu0 0.0
    %1194 = vmatpush.msra.mxu0 0.0
    %1195 = vmatpush.msra.mxu0 0.0
    %1196 = vmatpush.msra.mxu0 0.0
    %1197 = vmatpush.msra.mxu0 0.0
    %1198 = vmatpush.msra.mxu0 %v1157
    %1199 = vmatmul.f32.gmra.mxu0 %v1153
    %v1200 = vpop.f32.mrf.mxu0
    %v1201 = vadd.f32 0.0, %v1200
    %1202 = vdwg.mxu0
    %1203 = vmatpush.msra.mxu0 0.0
    %1204 = vmatpush.msra.mxu0 0.0
    %1205 = vmatpush.msra.mxu0 0.0
    %1206 = vmatpush.msra.mxu0 0.0
    %1207 = vmatpush.msra.mxu0 0.0
    %1208 = vmatpush.msra.mxu0 0.0
    %1209 = vmatpush.msra.mxu0 0.0
    %1210 = vmatpush.msra.mxu0 0.0
    %1211 = vmatpush.msra.mxu0 0.0
    %1212 = vmatpush.msra.mxu0 0.0
    %1213 = vmatpush.msra.mxu0 0.0
    %1214 = vmatpush.msra.mxu0 0.0
    %1215 = vmatpush.msra.mxu0 0.0
    %1216 = vmatpush.msra.mxu0 0.0
    %1217 = vmatpush.msra.mxu0 0.0
    %1218 = vmatpush.msra.mxu0 %v1159
    %1219 = vmatmul.f32.gmra.mxu0 %v1153
    %v1220 = vpop.f32.mrf.mxu0
    %v1221 = vadd.f32 0.0, %v1220
    %1222 = vdwg.mxu0
    %1223 = vmatpush.msra.mxu0 0.0
    %1224 = vmatpush.msra.mxu0 0.0
    %1225 = vmatpush.msra.mxu0 0.0
    %1226 = vmatpush.msra.mxu0 0.0
    %1227 = vmatpush.msra.mxu0 0.0
    %1228 = vmatpush.msra.mxu0 0.0
    %1229 = vmatpush.msra.mxu0 0.0
    %1230 = vmatpush.msra.mxu0 0.0
    %1231 = vmatpush.msra.mxu0 0.0
    %1232 = vmatpush.msra.mxu0 0.0
    %1233 = vmatpush.msra.mxu0 0.0
    %1234 = vmatpush.msra.mxu0 0.0
    %1235 = vmatpush.msra.mxu0 0.0
    %1236 = vmatpush.msra.mxu0 0.0
    %1237 = vmatpush.msra.mxu0 0.0
    %1238 = vmatpush.msra.mxu0 %v1161
    %1239 = vmatmul.f32.gmra.mxu0 %v1153
    %v1240 = vpop.f32.mrf.mxu0
    %v1241 = vadd.f32 0.0, %v1240
    %1242 = vdwg.mxu0
    %v1243 = vadd.f32 %v1063, %v1181
    %v1244 = vadd.f32 %v1064, %v1201
    %v1245 = vadd.f32 %v1065, %v1221
    %v1246 = vadd.f32 %v1066, %v1241
    %v1247 = vld [vmem:[#allocation2 + $0x4] sm:$0xff]
    %v1248 = vld [vmem:[#allocation2 + $0xc] sm:$0xff]
    %v1249 = vld [vmem:[#allocation2 + $0x14] sm:$0xf]
    %s1250 = scalar_lea.vmem %s2, 28
    %v1251 = vld [vmem:[%s1250] sm:$0xf]
    %v1253 = vperm.slane %v1251, 0
    %v1254 = vperm.slane %v1251, 1
    %v1255 = vperm.slane %v1251, 2
    %v1256 = vperm.slane %v1251, 3
    %v1257 = vrot.slane %v1254, 4
    %v1258 = vrot.slane %v1256, 4
    %v1259 = vsel %vm40, %v1253, %v1257
    %v1260 = vsel %vm40, %v1255, %v1258
    %1261 = vrot.lane.b32.xlu0 %v1259, 16
    %v1262 = vpop.permute.xlu0 %1261
    %1263 = vrot.lane.b32.xlu0 %v1260, 16
    %v1264 = vpop.permute.xlu0 %1263
    %v1265 = vrot.slane %v1262, 4
    %v1266 = vrot.slane %v1264, 4
    %v1267 = vsel %vm154, %v1265, %v1262
    %v1268 = vsel %vm40, %v1265, %v1266
    %v1269 = vsel %vm154, %v1268, %v1264
    %v1273 = vmul.f32 %v1247, %v1267
    %v1274 = vmul.f32 %v1248, %v1269
    %v1275 = vmul.f32 %v1249, %v1266
    %v1276 = vld [vmem:[%s1 + $0x7] sm:$0x1]
    %v1277 = vld [vmem:[%s1 + $0x17] sm:$0x1]
    %v1278 = vld [vmem:[%s1 + $0x27] sm:$0x1]
    %v1279 = vld [vmem:[%s1 + $0x37] sm:$0x1]
    %v1280 = vld [vmem:[%s1 + $0x47] sm:$0x1]
    %v1281 = vld [vmem:[%s1 + $0x57] sm:$0x1]
    %v1282 = vld [vmem:[%s1 + $0x67] sm:$0x1]
    %v1283 = vld [vmem:[%s1 + $0x77] sm:$0x1]
    %v1292 = vrot.slane %v1277, 7
    %v1293 = vsel %vm111, %v1292, %v1276
    %v1294 = vrot.slane %v1278, 6
    %v1295 = vsel %vm114, %v1294, %v1293
    %v1296 = vrot.slane %v1279, 5
    %v1297 = vsel %vm117, %v1296, %v1295
    %v1298 = vrot.slane %v1280, 4
    %v1299 = vsel %vm120, %v1298, %v1297
    %v1300 = vrot.slane %v1281, 3
    %v1301 = vsel %vm123, %v1300, %v1299
    %v1302 = vrot.slane %v1282, 2
    %v1303 = vsel %vm126, %v1302, %v1301
    %v1304 = vrot.slane %v1283, 1
    %v1305 = vsel %vm129, %v1304, %v1303
    %1309 = vst [vmem:[#allocation1] ss:$2 sm:$0xff] %v1273
    %s1310 = scalar_lea.vmem [#allocation1], 16
    %1311 = vst [vmem:[%s1310] ss:$2 sm:$0xff] %v1274
    %s1312 = scalar_lea.vmem [#allocation1], 32
    %1313 = vst [vmem:[%s1312] ss:$2 sm:$0xff] %v1275
    %v1314 = vld.sshfl [vmem:[#allocation1] sm:$0xff pattern:$0x75316420]
    %v1315 = vld.sshfl [vmem:[#allocation1 + $0x8] sm:$0xff pattern:$0x75316420]
    %v1316 = vld.sshfl [vmem:[#allocation1 + $0x10] sm:$0xff pattern:$0x75316420]
    %v1317 = vld.sshfl [vmem:[#allocation1 + $0x18] sm:$0xff pattern:$0x75316420]
    %v1318 = vld.sshfl [vmem:[#allocation1 + $0x20] sm:$0xff pattern:$0x75316420]
    %1319 = vrot.lane.b32.xlu0 %v1314, 112
    %v1320 = vpop.permute.xlu0 %1319
    %1321 = vrot.lane.b32.xlu0 %v1315, 112
    %v1322 = vpop.permute.xlu0 %1321
    %1323 = vrot.lane.b32.xlu0 %v1316, 112
    %v1324 = vpop.permute.xlu0 %1323
    %1325 = vrot.lane.b32.xlu0 %v1317, 112
    %v1326 = vpop.permute.xlu0 %1325
    %1327 = vrot.lane.b32.xlu0 %v1318, 112
    %v1328 = vpop.permute.xlu0 %1327
    %v1329 = vsel %vm84, %v1320, %v1322
    %v1330 = vsel %vm84, %v1322, %v1324
    %v1331 = vsel %vm84, %v1324, %v1326
    %v1332 = vsel %vm84, %v1326, %v1328
    %v1333 = vsel %vm159, %v1305, 0
    %v1335 = vsel %vm40, %v1329, 0
    %v1337 = vsel %vm40, %v1330, 0
    %v1339 = vsel %vm40, %v1331, 0
    %v1341 = vsel %vm40, %v1332, 0
    %1343 = vmatpush.msra.mxu0 0.0
    %1344 = vmatpush.msra.mxu0 0.0
    %1345 = vmatpush.msra.mxu0 0.0
    %1346 = vmatpush.msra.mxu0 0.0
    %1347 = vmatpush.msra.mxu0 0.0
    %1348 = vmatpush.msra.mxu0 0.0
    %1349 = vmatpush.msra.mxu0 0.0
    %1350 = vmatpush.msra.mxu0 0.0
    %1351 = vmatpush.msra.mxu0 0.0
    %1352 = vmatpush.msra.mxu0 0.0
    %1353 = vmatpush.msra.mxu0 0.0
    %1354 = vmatpush.msra.mxu0 0.0
    %1355 = vmatpush.msra.mxu0 0.0
    %1356 = vmatpush.msra.mxu0 0.0
    %1357 = vmatpush.msra.mxu0 0.0
    %1358 = vmatpush.msra.mxu0 %v1335
    %1359 = vmatmul.f32.gmra.mxu0 %v1333
    %v1360 = vpop.f32.mrf.mxu0
    %v1361 = vadd.f32 0.0, %v1360
    %1362 = vdwg.mxu0
    %1363 = vmatpush.msra.mxu0 0.0
    %1364 = vmatpush.msra.mxu0 0.0
    %1365 = vmatpush.msra.mxu0 0.0
    %1366 = vmatpush.msra.mxu0 0.0
    %1367 = vmatpush.msra.mxu0 0.0
    %1368 = vmatpush.msra.mxu0 0.0
    %1369 = vmatpush.msra.mxu0 0.0
    %1370 = vmatpush.msra.mxu0 0.0
    %1371 = vmatpush.msra.mxu0 0.0
    %1372 = vmatpush.msra.mxu0 0.0
    %1373 = vmatpush.msra.mxu0 0.0
    %1374 = vmatpush.msra.mxu0 0.0
    %1375 = vmatpush.msra.mxu0 0.0
    %1376 = vmatpush.msra.mxu0 0.0
    %1377 = vmatpush.msra.mxu0 0.0
    %1378 = vmatpush.msra.mxu0 %v1337
    %1379 = vmatmul.f32.gmra.mxu0 %v1333
    %v1380 = vpop.f32.mrf.mxu0
    %v1381 = vadd.f32 0.0, %v1380
    %1382 = vdwg.mxu0
    %1383 = vmatpush.msra.mxu0 0.0
    %1384 = vmatpush.msra.mxu0 0.0
    %1385 = vmatpush.msra.mxu0 0.0
    %1386 = vmatpush.msra.mxu0 0.0
    %1387 = vmatpush.msra.mxu0 0.0
    %1388 = vmatpush.msra.mxu0 0.0
    %1389 = vmatpush.msra.mxu0 0.0
    %1390 = vmatpush.msra.mxu0 0.0
    %1391 = vmatpush.msra.mxu0 0.0
    %1392 = vmatpush.msra.mxu0 0.0
    %1393 = vmatpush.msra.mxu0 0.0
    %1394 = vmatpush.msra.mxu0 0.0
    %1395 = vmatpush.msra.mxu0 0.0
    %1396 = vmatpush.msra.mxu0 0.0
    %1397 = vmatpush.msra.mxu0 0.0
    %1398 = vmatpush.msra.mxu0 %v1339
    %1399 = vmatmul.f32.gmra.mxu0 %v1333
    %v1400 = vpop.f32.mrf.mxu0
    %v1401 = vadd.f32 0.0, %v1400
    %1402 = vdwg.mxu0
    %1403 = vmatpush.msra.mxu0 0.0
    %1404 = vmatpush.msra.mxu0 0.0
    %1405 = vmatpush.msra.mxu0 0.0
    %1406 = vmatpush.msra.mxu0 0.0
    %1407 = vmatpush.msra.mxu0 0.0
    %1408 = vmatpush.msra.mxu0 0.0
    %1409 = vmatpush.msra.mxu0 0.0
    %1410 = vmatpush.msra.mxu0 0.0
    %1411 = vmatpush.msra.mxu0 0.0
    %1412 = vmatpush.msra.mxu0 0.0
    %1413 = vmatpush.msra.mxu0 0.0
    %1414 = vmatpush.msra.mxu0 0.0
    %1415 = vmatpush.msra.mxu0 0.0
    %1416 = vmatpush.msra.mxu0 0.0
    %1417 = vmatpush.msra.mxu0 0.0
    %1418 = vmatpush.msra.mxu0 %v1341
    %1419 = vmatmul.f32.gmra.mxu0 %v1333
    %v1420 = vpop.f32.mrf.mxu0
    %v1421 = vadd.f32 0.0, %v1420
    %1422 = vdwg.mxu0
    %v1423 = vadd.f32 %v1243, %v1361
    %v1424 = vadd.f32 %v1244, %v1381
    %v1425 = vadd.f32 %v1245, %v1401
    %v1426 = vadd.f32 %v1246, %v1421
    %v1427 = vld [vmem:[#allocation2 + $0x4] sm:$0xff]
    %v1428 = vld [vmem:[#allocation2 + $0xc] sm:$0xff]
    %v1429 = vld [vmem:[#allocation2 + $0x14] sm:$0xf]
    %s1430 = scalar_lea.vmem %s2, 32
    %v1431 = vld [vmem:[%s1430] sm:$0xf]
    %v1433 = vperm.slane %v1431, 0
    %v1434 = vperm.slane %v1431, 1
    %v1435 = vperm.slane %v1431, 2
    %v1436 = vperm.slane %v1431, 3
    %v1437 = vrot.slane %v1434, 4
    %v1438 = vrot.slane %v1436, 4
    %v1439 = vsel %vm40, %v1433, %v1437
    %v1440 = vsel %vm40, %v1435, %v1438
    %1441 = vrot.lane.b32.xlu0 %v1439, 17
    %v1442 = vpop.permute.xlu0 %1441
    %1443 = vrot.lane.b32.xlu0 %v1440, 17
    %v1444 = vpop.permute.xlu0 %1443
    %v1445 = vrot.slane %v1442, 4
    %v1446 = vrot.slane %v1444, 4
    %v1447 = vsel %vm295, %v1445, %v1442
    %v1448 = vsel %vm40, %v1445, %v1446
    %v1449 = vsel %vm295, %v1448, %v1444
    %v1453 = vmul.f32 %v1427, %v1447
    %v1454 = vmul.f32 %v1428, %v1449
    %v1455 = vmul.f32 %v1429, %v1446
    %v1456 = vld [vmem:[%s1 + $0x8] sm:$0x1]
    %v1457 = vld [vmem:[%s1 + $0x18] sm:$0x1]
    %v1458 = vld [vmem:[%s1 + $0x28] sm:$0x1]
    %v1459 = vld [vmem:[%s1 + $0x38] sm:$0x1]
    %v1460 = vld [vmem:[%s1 + $0x48] sm:$0x1]
    %v1461 = vld [vmem:[%s1 + $0x58] sm:$0x1]
    %v1462 = vld [vmem:[%s1 + $0x68] sm:$0x1]
    %v1463 = vld [vmem:[%s1 + $0x78] sm:$0x1]
    %v1472 = vrot.slane %v1457, 7
    %v1473 = vsel %vm111, %v1472, %v1456
    %v1474 = vrot.slane %v1458, 6
    %v1475 = vsel %vm114, %v1474, %v1473
    %v1476 = vrot.slane %v1459, 5
    %v1477 = vsel %vm117, %v1476, %v1475
    %v1478 = vrot.slane %v1460, 4
    %v1479 = vsel %vm120, %v1478, %v1477
    %v1480 = vrot.slane %v1461, 3
    %v1481 = vsel %vm123, %v1480, %v1479
    %v1482 = vrot.slane %v1462, 2
    %v1483 = vsel %vm126, %v1482, %v1481
    %v1484 = vrot.slane %v1463, 1
    %v1485 = vsel %vm129, %v1484, %v1483
    %1489 = vst [vmem:[#allocation1] ss:$2 sm:$0xff] %v1453
    %s1490 = scalar_lea.vmem [#allocation1], 16
    %1491 = vst [vmem:[%s1490] ss:$2 sm:$0xff] %v1454
    %s1492 = scalar_lea.vmem [#allocation1], 32
    %1493 = vst [vmem:[%s1492] ss:$2 sm:$0xff] %v1455
    %v1494 = vld.sshfl [vmem:[#allocation1] sm:$0xff pattern:$0x75316420]
    %v1495 = vld.sshfl [vmem:[#allocation1 + $0x8] sm:$0xff pattern:$0x75316420]
    %v1496 = vld.sshfl [vmem:[#allocation1 + $0x10] sm:$0xff pattern:$0x75316420]
    %v1497 = vld.sshfl [vmem:[#allocation1 + $0x18] sm:$0xff pattern:$0x75316420]
    %v1498 = vld.sshfl [vmem:[#allocation1 + $0x20] sm:$0xff pattern:$0x75316420]
    %1499 = vrot.lane.b32.xlu0 %v1494, 111
    %v1500 = vpop.permute.xlu0 %1499
    %1501 = vrot.lane.b32.xlu0 %v1495, 111
    %v1502 = vpop.permute.xlu0 %1501
    %1503 = vrot.lane.b32.xlu0 %v1496, 111
    %v1504 = vpop.permute.xlu0 %1503
    %1505 = vrot.lane.b32.xlu0 %v1497, 111
    %v1506 = vpop.permute.xlu0 %1505
    %1507 = vrot.lane.b32.xlu0 %v1498, 111
    %v1508 = vpop.permute.xlu0 %1507
    %v1509 = vsel %vm49, %v1500, %v1502
    %v1510 = vsel %vm49, %v1502, %v1504
    %v1511 = vsel %vm49, %v1504, %v1506
    %v1512 = vsel %vm49, %v1506, %v1508
    %v1513 = vsel %vm159, %v1485, 0
    %v1515 = vsel %vm40, %v1509, 0
    %v1517 = vsel %vm40, %v1510, 0
    %v1519 = vsel %vm40, %v1511, 0
    %v1521 = vsel %vm40, %v1512, 0
    %1523 = vmatpush.msra.mxu0 0.0
    %1524 = vmatpush.msra.mxu0 0.0
    %1525 = vmatpush.msra.mxu0 0.0
    %1526 = vmatpush.msra.mxu0 0.0
    %1527 = vmatpush.msra.mxu0 0.0
    %1528 = vmatpush.msra.mxu0 0.0
    %1529 = vmatpush.msra.mxu0 0.0
    %1530 = vmatpush.msra.mxu0 0.0
    %1531 = vmatpush.msra.mxu0 0.0
    %1532 = vmatpush.msra.mxu0 0.0
    %1533 = vmatpush.msra.mxu0 0.0
    %1534 = vmatpush.msra.mxu0 0.0
    %1535 = vmatpush.msra.mxu0 0.0
    %1536 = vmatpush.msra.mxu0 0.0
    %1537 = vmatpush.msra.mxu0 0.0
    %1538 = vmatpush.msra.mxu0 %v1515
    %1539 = vmatmul.f32.gmra.mxu0 %v1513
    %v1540 = vpop.f32.mrf.mxu0
    %v1541 = vadd.f32 0.0, %v1540
    %1542 = vdwg.mxu0
    %1543 = vmatpush.msra.mxu0 0.0
    %1544 = vmatpush.msra.mxu0 0.0
    %1545 = vmatpush.msra.mxu0 0.0
    %1546 = vmatpush.msra.mxu0 0.0
    %1547 = vmatpush.msra.mxu0 0.0
    %1548 = vmatpush.msra.mxu0 0.0
    %1549 = vmatpush.msra.mxu0 0.0
    %1550 = vmatpush.msra.mxu0 0.0
    %1551 = vmatpush.msra.mxu0 0.0
    %1552 = vmatpush.msra.mxu0 0.0
    %1553 = vmatpush.msra.mxu0 0.0
    %1554 = vmatpush.msra.mxu0 0.0
    %1555 = vmatpush.msra.mxu0 0.0
    %1556 = vmatpush.msra.mxu0 0.0
    %1557 = vmatpush.msra.mxu0 0.0
    %1558 = vmatpush.msra.mxu0 %v1517
    %1559 = vmatmul.f32.gmra.mxu0 %v1513
    %v1560 = vpop.f32.mrf.mxu0
    %v1561 = vadd.f32 0.0, %v1560
    %1562 = vdwg.mxu0
    %1563 = vmatpush.msra.mxu0 0.0
    %1564 = vmatpush.msra.mxu0 0.0
    %1565 = vmatpush.msra.mxu0 0.0
    %1566 = vmatpush.msra.mxu0 0.0
    %1567 = vmatpush.msra.mxu0 0.0
    %1568 = vmatpush.msra.mxu0 0.0
    %1569 = vmatpush.msra.mxu0 0.0
    %1570 = vmatpush.msra.mxu0 0.0
    %1571 = vmatpush.msra.mxu0 0.0
    %1572 = vmatpush.msra.mxu0 0.0
    %1573 = vmatpush.msra.mxu0 0.0
    %1574 = vmatpush.msra.mxu0 0.0
    %1575 = vmatpush.msra.mxu0 0.0
    %1576 = vmatpush.msra.mxu0 0.0
    %1577 = vmatpush.msra.mxu0 0.0
    %1578 = vmatpush.msra.mxu0 %v1519
    %1579 = vmatmul.f32.gmra.mxu0 %v1513
    %v1580 = vpop.f32.mrf.mxu0
    %v1581 = vadd.f32 0.0, %v1580
    %1582 = vdwg.mxu0
    %1583 = vmatpush.msra.mxu0 0.0
    %1584 = vmatpush.msra.mxu0 0.0
    %1585 = vmatpush.msra.mxu0 0.0
    %1586 = vmatpush.msra.mxu0 0.0
    %1587 = vmatpush.msra.mxu0 0.0
    %1588 = vmatpush.msra.mxu0 0.0
    %1589 = vmatpush.msra.mxu0 0.0
    %1590 = vmatpush.msra.mxu0 0.0
    %1591 = vmatpush.msra.mxu0 0.0
    %1592 = vmatpush.msra.mxu0 0.0
    %1593 = vmatpush.msra.mxu0 0.0
    %1594 = vmatpush.msra.mxu0 0.0
    %1595 = vmatpush.msra.mxu0 0.0
    %1596 = vmatpush.msra.mxu0 0.0
    %1597 = vmatpush.msra.mxu0 0.0
    %1598 = vmatpush.msra.mxu0 %v1521
    %1599 = vmatmul.f32.gmra.mxu0 %v1513
    %v1600 = vpop.f32.mrf.mxu0
    %v1601 = vadd.f32 0.0, %v1600
    %1602 = vdwg.mxu0
    %v1603 = vadd.f32 %v1423, %v1541
    %v1604 = vadd.f32 %v1424, %v1561
    %v1605 = vadd.f32 %v1425, %v1581
    %v1606 = vadd.f32 %v1426, %v1601
    %v1607 = vadd.f32 %v1603, %v1604
    %v1608 = vadd.f32 %v1607, %v1605
    %v1609 = vadd.f32 %v1608, %v1606
    %1610 = vadd.xlane.f32.xlu0 %v1609
    %v1611 = vpop.xlane.xlu0 %1610
    %v1612 = vmul.f32 %v1611, 0.001953125
    %v1613 = vmul.f32 %v1603, %v1603
    %v1614 = vmul.f32 %v1604, %v1604
    %v1615 = vmul.f32 %v1605, %v1605
    %v1616 = vmul.f32 %v1606, %v1606
    %v1617 = vadd.f32 %v1613, %v1614
    %v1618 = vadd.f32 %v1617, %v1615
    %v1619 = vadd.f32 %v1618, %v1616
    %1620 = vadd.xlane.f32.xlu0 %v1619
    %v1621 = vpop.xlane.xlu0 %1620
    %v1622 = vmul.f32 %v1621, 0.001953125
    %v1623 = vmul.f32 %v1612, %v1612
    %v1624 = vsub.f32 %v1622, %v1623
    %v1625 = vld [vmem:[%s3] sm:$0xff]
    %v1626 = vadd.f32 %v1624, 1e-05
    %v1627 = vrsqrt.pop %v1626
    %v1628 = vmul.f32 %v1627, %v1626
    %v1629 = vmul.f32 %v1628, %v1627
    %v1630 = vmul.f32 0.5, %v1629
    %v1631 = vsub.f32 1.5, %v1630
    %v1632 = vmul.f32 %v1627, %v1631
    %vm1633 = vweird.f32 %v1626
    %vm1634 = vweird.f32 %v1627
    %vm1635 = vmor %vm1633, %vm1634
    %v1636 = vsel %vm1635, %v1627, %v1632
    %v1637 = vmul.f32 %v1625, %v1636
    %v1638 = vld [vmem:[%s4] sm:$0xff]
    %v1639 = vmul.f32 %v1612, %v1637
    %v1640 = vsub.f32 %v1638, %v1639
    %1642 = vset.pattern.permute.xlu0 0
    %1643 = vperm.xlu0 %1642, %v1637
    %v1644 = vpop.permute.xlu0 %1643
    %v1646 = vmul.f32 %v1603, %v1644
    %v1647 = vmul.f32 %v1604, %v1644
    %v1648 = vmul.f32 %v1605, %v1644
    %v1649 = vmul.f32 %v1606, %v1644
    %1651 = vset.pattern.permute.xlu0 0
    %1652 = vperm.xlu0 %1651, %v1640
    %v1653 = vpop.permute.xlu0 %1652
    %v1655 = vadd.f32 %v1646, %v1653
    %v1656 = vadd.f32 %v1647, %v1653
    %v1657 = vadd.f32 %v1648, %v1653
    %v1658 = vadd.f32 %v1649, %v1653
    %1659 = vst [vmem:[#allocation3] sm:$0xff] %v1655
    %1660 = vst [vmem:[#allocation3 + $0x8] sm:$0xff] %v1656
    %1661 = vst [vmem:[#allocation3 + $0x10] sm:$0xff] %v1657
    %1662 = vst [vmem:[#allocation3 + $0x18] sm:$0xff] %v1658
    // Predicated region
    $region22: #{tpu_custom_call.1} parent=1 // pred_check
      _
    $region23: #{tpu_custom_call.1} parent=1 // pred_check_branch
      %1664 = sbr.rel (0) target = $region25
    $region24: #{tpu_custom_call.1} parent=1 // pred_region
      %1666 = vsyncadd [#allocation4], 0
      %s1668 = sshll.u32 [#allocation3], 4
      %s1669 = int_to_ptr.vmem [resolvable:$true] %s1668
      %s1670 = sshll.u32 %s5, 4
      %s1671 = int_to_ptr.hbm [resolvable:$true] %s1670
      %1673 = dma.vmem_to_hbm [thread:$0]  %s1669, 512, %s1671, [#allocation4]
    $region25: #{tpu_custom_call.1} parent=1 // pred_fallthru
      _
    // Predicated region
    $region26: #{tpu_custom_call.1} parent=1 // pred_check
      _
    $region27: #{tpu_custom_call.1} parent=1 // pred_check_branch
      %1675 = sbr.rel (0) target = $region29
    $region28: #{tpu_custom_call.1} parent=1 // pred_region
      %1677 = dma.done [#allocation4], 512
    $region29: #{tpu_custom_call.1} parent=1 // pred_fallthru
      _
    %1678 = vsyncpa [#allocation4], 1

</llo_original>
